<compile_context>
chip_gen: v6e
topology: v6e:2x2x1
jax: 0.10.0
libtpu: 0.0.40
codegen_flags: <defaults>
</compile_context>

<pallas_src>
import functools

import jax
import jax.numpy as jnp
from jax.experimental import pallas as pl
from jax.experimental.pallas import tpu as pltpu


# ---------------------------------------------------------------------------
# Kernel
# ---------------------------------------------------------------------------
def _fused_net_kernel(x_ref, w_ref, b_ref, out_ref, *,
                      num_layers, skip_slots, d_out_last):
    """Fused forward on one batch tile (lane-dense, transposed layout).

    x_ref  : (D, tm)            padded, transposed input tile (rows >= d_in0 are zero)
    w_ref  : (n_slots, D, D)    zero-padded per-layer weights; slots [0..L-1] are the main
                                weights, trailing slots are the latent_in skip weights
    b_ref  : (L, D, 1)          zero-padded per-layer biases
    out_ref: (d_out_last, tm)
    """
    skip = dict(skip_slots)
    x0 = x_ref[...]
    x = x0
    for i in range(num_layers):
        y = jnp.dot(w_ref[i], x, preferred_element_type=jnp.float32)
        if i in skip:
            # latent_in skip connection, expressed as a second matmul on the original
            # input instead of an in-kernel concatenate.
            y = y + jnp.dot(w_ref[skip[i]], x0, preferred_element_type=jnp.float32)
        y = y + b_ref[i]
        if i < num_layers - 1:
            y = jnp.maximum(y, 0.0)
        x = y
    out_ref[...] = jnp.tanh(x[:d_out_last, :]).astype(out_ref.dtype)


# ---------------------------------------------------------------------------
# Parameter preparation (exact algebraic folding + packing)
# ---------------------------------------------------------------------------
def _round_up(a, b):
    return (a + b - 1) // b * b


def prepare_packed_params(layer_params, d_in0, latent_in):
    """Fold exp(Sigma) and the A@B low-rank product into one dense (d_out,d_in) weight per
    layer, split latent_in layers into (main, skip) parts, and pack everything into a single
    zero-padded weight stack plus a bias stack (all f32).

    layer_params: list of (U, Sigma, Vt, bias, res_u, res_sigma, res_vt) with PyTorch
    nn.Linear layout (out_features, in_features)."""
    hi = jax.lax.Precision.HIGHEST
    dense_ws, biases = [], []
    for (u, sigma, vt, bias, res_u, res_sigma, res_vt) in layer_params:
        w_main = jnp.dot(u.astype(jnp.float32),
                         (jnp.exp(sigma)[:, None] * vt).astype(jnp.float32),
                         precision=hi)                                    # (d_out, d_in)
        w_res = jnp.dot(res_u.astype(jnp.float32),
                        (jnp.exp(res_sigma)[:, None] * res_vt).astype(jnp.float32),
                        precision=hi)                                     # (d_out, d_in)
        dense_ws.append(w_main + w_res)
        biases.append(bias.astype(jnp.float32))

    d_pad = _round_up(max([w.shape[0] for w in dense_ws] + [d_in0]), 8)

    def pad2(w):
        return jnp.zeros((d_pad, d_pad), jnp.float32).at[:w.shape[0], :w.shape[1]].set(w)

    slots, pending_skips = [], []
    prev_out = d_in0
    for i, w in enumerate(dense_ws):
        if i in latent_in:
            # PyTorch forward concatenates [x, input]; columns [:prev_out] act on the
            # running activation, the trailing d_in0 columns act on the original input.
            slots.append(pad2(w[:, :prev_out]))
            pending_skips.append((i, pad2(w[:, prev_out:])))
        else:
            slots.append(pad2(w))
        prev_out = w.shape[0]

    skip_slots = []
    for (i, w_skip) in pending_skips:
        skip_slots.append((i, len(slots)))
        slots.append(w_skip)

    w_stack = jnp.stack(slots, axis=0)                                    # (n_slots, D, D)
    b_stack = jnp.stack(
        [jnp.zeros((d_pad,), jnp.float32).at[:b.shape[0]].set(b) for b in biases],
        axis=0)[:, :, None]                                               # (L, D, 1)
    d_out_last = dense_ws[-1].shape[0]
    return w_stack, b_stack, tuple(skip_slots), d_pad, d_out_last


# ---------------------------------------------------------------------------
# Tiling heuristics
# ---------------------------------------------------------------------------
def _has_two_tensorcores():
    """v4 (megacore) and v7x expose 2 TensorCores behind one Pallas device."""
    try:
        kind = str(jax.devices()[0].device_kind).lower()
    except Exception:
        return False
    return any(tag in kind for tag in ("v4", "v7", "7x"))


def _pick_tile(n, two_cores, tm_cap_multi=1024, tm_cap_single=2048):
    """Lane-axis batch tile: a multiple of 128, or the full extent for a single tile."""
    if two_cores and n > 128:
        tm = min(_round_up(pl.cdiv(n, 2), 128), tm_cap_multi)   # >=2 parallel tiles
    else:
        tm = min(_round_up(n, 128), tm_cap_single)              # one fat tile (serial grid)
    return n if tm >= n else tm


# ---------------------------------------------------------------------------
# Public wrapper
# ---------------------------------------------------------------------------
def adaptive_dict_exp_forward(layer_params, x, latent_in=(4,), two_cores=None):
    """Single fused Pallas call for the whole AdaptiveDict_exp forward. Returns (n, d_out)."""
    latent_in = tuple(sorted(latent_in))
    n, d_in0 = x.shape
    num_layers = len(layer_params)

    w_stack, b_stack, skip_slots, d_pad, d_out_last = prepare_packed_params(
        layer_params, d_in0, latent_in)

    # Lane-dense layout: batch on the lane axis; pad feature dim to d_pad with zero rows.
    x_t = jnp.pad(x.astype(jnp.float32).T, ((0, d_pad - d_in0), (0, 0)))  # (D, n)

    if two_cores is None:
        two_cores = _has_two_tensorcores()
    tm = _pick_tile(n, two_cores)
    grid = (pl.cdiv(n, tm),)

    kernel = functools.partial(_fused_net_kernel,
                               num_layers=num_layers,
                               skip_slots=skip_slots,
                               d_out_last=d_out_last)

    n_slots = w_stack.shape[0]
    flops = 2 * n * d_pad * d_pad * n_slots + 3 * n * d_pad * num_layers
    transcendentals = n * d_out_last
    bytes_accessed = 4 * (x_t.size + w_stack.size + b_stack.size + d_out_last * n)

    out_t = pl.pallas_call(
        kernel,
        out_shape=jax.ShapeDtypeStruct((d_out_last, n), jnp.float32),
        grid_spec=pltpu.PrefetchScalarGridSpec(
            num_scalar_prefetch=0,
            grid=grid,
            in_specs=[
                pl.BlockSpec((d_pad, tm), lambda i: (0, i)),        # input batch tile
                pl.BlockSpec(w_stack.shape, lambda i: (0, 0, 0)),   # packed weights (resident)
                pl.BlockSpec(b_stack.shape, lambda i: (0, 0, 0)),   # packed biases (resident)
            ],
            out_specs=pl.BlockSpec((d_out_last, tm), lambda i: (0, i)),
        ),
        compiler_params=pltpu.CompilerParams(
            dimension_semantics=("parallel",)),
        cost_estimate=pl.CostEstimate(
            flops=int(flops),
            transcendentals=int(transcendentals),
            bytes_accessed=int(bytes_accessed)),
    )(x_t, w_stack, b_stack)

    return out_t.T                                                   # (n, d_out_last)


# ---------------------------------------------------------------------------
# Pure-jnp reference (mirrors the PyTorch forward, square-diag case)
# ---------------------------------------------------------------------------
def adaptive_dict_exp_reference(layer_params, x, latent_in=(4,)):
    hi = jax.lax.Precision.HIGHEST
    inp = x
    num_layers = len(layer_params)
    for i, (u, sigma, vt, bias, res_u, res_sigma, res_vt) in enumerate(layer_params):
        if i in latent_in:
            x = jnp.concatenate([x, inp], axis=1)
        x1 = jnp.dot(x, vt.T, precision=hi) * jnp.exp(sigma)[None, :]
        x1 = jnp.dot(x1, u.T, precision=hi) + bias[None, :]
        x2 = jnp.dot(x, res_vt.T, precision=hi) * jnp.exp(res_sigma)[None, :]
        x2 = jnp.dot(x2, res_u.T, precision=hi)
        x = x1 + x2
        if i < num_layers - 1:
            x = jnp.maximum(x, 0.0)
    return jnp.tanh(x)


def make_params(key, in_dims, out_dims, ranks, adaptive_rank):
    """Synthetic U/Sigma/Vt/bias + res_u/res_sigma/res_vt with the shapes __init__ expects."""
    params = []
    for di, do, r in zip(in_dims, out_dims, ranks):
        rk = min(adaptive_rank, r)
        k1, k2, k3, k4, k5, k6, k7, key = jax.random.split(key, 8)
        u = jax.random.normal(k1, (do, r), jnp.float32) * 0.2        # U[i]:      (out, r)
        sigma = jax.random.normal(k2, (r,), jnp.float32) * 0.1       # Sigma[i]:  (r,)
        vt = jax.random.normal(k3, (r, di), jnp.float32) * 0.2       # Vt[i]:     (r, in)
        bias = jax.random.normal(k4, (do,), jnp.float32) * 0.05      # bias[i]:   (out,)
        res_u = jax.random.normal(k5, (do, rk), jnp.float32) * 0.2   # res_u[i]:  (out, rk)
        res_sigma = jax.random.normal(k6, (rk,), jnp.float32) * 0.1  # res_sigma: (rk,)
        res_vt = jax.random.normal(k7, (rk, di), jnp.float32) * 0.2  # res_vt[i]: (rk, in)
        params.append((u, sigma, vt, bias, res_u, res_sigma, res_vt))
    return params


if __name__ == "__main__":
    # 6 layers, latent_in=[4]: input dim 16 (latent code + xyz), hidden 32, output 3 (xyz),
    # SVD rank 16, adaptive residual rank 8.  Batch 512 -> 2 lane-tiles of 256 on dual-TC
    # chips, one 512-wide tile on single-TC chips.
    N = 512
    D_IN = 16
    H = 32
    D_OUT = 3
    R = 16
    ADAPTIVE_RANK = 8
    NUM_LAYERS = 6
    LATENT_IN = (4,)

    in_dims = [D_IN, H, H, H, H + D_IN, H]   # layer 4 sees concat([x, input])
    out_dims = [H, H, H, H, H, D_OUT]
    ranks = [R] * NUM_LAYERS

    key = jax.random.PRNGKey(0)
    kx, kp = jax.random.split(key)
    x = jax.random.normal(kx, (N, D_IN), jnp.float32)
    params = make_params(kp, in_dims, out_dims, ranks, ADAPTIVE_RANK)

    out = adaptive_dict_exp_forward(params, x, latent_in=LATENT_IN)
    out = jax.block_until_ready(out)

    ref = adaptive_dict_exp_reference(params, x, latent_in=LATENT_IN)
    assert out.shape == (N, D_OUT), out.shape
    err = float(jnp.max(jnp.abs(out - ref)))
    assert jnp.allclose(out, ref, atol=1e-3, rtol=1e-3), err

    print("KERNEL_OK")
</pallas_src>

<mosaic_0001>
module attributes {stable_mosaic.version = 11 : i64} {
  func.func @_fused_net_kernel(%arg0: i32, %arg1: memref<32x512xf32, #tpu.memory_space<vmem>>, %arg2: memref<7x32x32xf32, #tpu.memory_space<vmem>>, %arg3: memref<6x32x1xf32, #tpu.memory_space<vmem>>, %arg4: memref<3x512xf32, #tpu.memory_space<vmem>>) attributes {dimension_semantics = [#tpu.dimension_semantics<parallel>], iteration_bounds = array<i64: 1>, scalar_prefetch = 0 : i64, scratch_operands = 0 : i64, tpu.core_type = #tpu.core_type<tc>, window_params = [{transform_indices = @transform_0, window_bounds = array<i64: 32, 512>}, {pipeline_mode = #tpu.pipeline_mode<synchronous>, transform_indices = @transform_1, window_bounds = array<i64: 7, 32, 32>}, {pipeline_mode = #tpu.pipeline_mode<synchronous>, transform_indices = @transform_2, window_bounds = array<i64: 6, 32, 1>}, {transform_indices = @transform_3, window_bounds = array<i64: 3, 512>}]} {
    %c0 = arith.constant 0 : index
    %c0_0 = arith.constant 0 : index
    %0 = vector.load %arg1[%c0, %c0_0] : memref<32x512xf32, #tpu.memory_space<vmem>>, vector<32x512xf32>
    %c0_1 = arith.constant 0 : index
    %c0_2 = arith.constant 0 : index
    %c0_3 = arith.constant 0 : index
    %1 = vector.load %arg2[%c0_1, %c0_2, %c0_3] : memref<7x32x32xf32, #tpu.memory_space<vmem>>, vector<1x32x32xf32>
    %2 = vector.shape_cast %1 : vector<1x32x32xf32> to vector<32x32xf32>
    %cst = arith.constant dense<0.000000e+00> : vector<32x512xf32>
    %3 = tpu.matmul %2, %0, %cst {dimension_numbers = #tpu.dot_dimension_numbers<[1], [0], [0], [1], [0, 0, 1, 1], [], []>} : vector<32x32xf32>, vector<32x512xf32>, vector<32x512xf32> -> vector<32x512xf32>
    %c0_4 = arith.constant 0 : index
    %c0_5 = arith.constant 0 : index
    %c0_6 = arith.constant 0 : index
    %4 = vector.load %arg3[%c0_4, %c0_5, %c0_6] : memref<6x32x1xf32, #tpu.memory_space<vmem>>, vector<1x32x1xf32>
    %5 = vector.shape_cast %4 : vector<1x32x1xf32> to vector<32x1xf32>
    %6 = vector.broadcast %5 : vector<32x1xf32> to vector<32x512xf32>
    %7 = arith.addf %3, %6 : vector<32x512xf32>
    %cst_7 = arith.constant 0.000000e+00 : f32
    %8 = vector.broadcast %cst_7 : f32 to vector<32x512xf32>
    %9 = arith.maximumf %7, %8 : vector<32x512xf32>
    %c1 = arith.constant 1 : index
    %c0_8 = arith.constant 0 : index
    %c0_9 = arith.constant 0 : index
    %10 = vector.load %arg2[%c1, %c0_8, %c0_9] : memref<7x32x32xf32, #tpu.memory_space<vmem>>, vector<1x32x32xf32>
    %11 = vector.shape_cast %10 : vector<1x32x32xf32> to vector<32x32xf32>
    %cst_10 = arith.constant dense<0.000000e+00> : vector<32x512xf32>
    %12 = tpu.matmul %11, %9, %cst_10 {dimension_numbers = #tpu.dot_dimension_numbers<[1], [0], [0], [1], [0, 0, 1, 1], [], []>} : vector<32x32xf32>, vector<32x512xf32>, vector<32x512xf32> -> vector<32x512xf32>
    %c1_11 = arith.constant 1 : index
    %c0_12 = arith.constant 0 : index
    %c0_13 = arith.constant 0 : index
    %13 = vector.load %arg3[%c1_11, %c0_12, %c0_13] : memref<6x32x1xf32, #tpu.memory_space<vmem>>, vector<1x32x1xf32>
    %14 = vector.shape_cast %13 : vector<1x32x1xf32> to vector<32x1xf32>
    %15 = vector.broadcast %14 : vector<32x1xf32> to vector<32x512xf32>
    %16 = arith.addf %12, %15 : vector<32x512xf32>
    %cst_14 = arith.constant 0.000000e+00 : f32
    %17 = vector.broadcast %cst_14 : f32 to vector<32x512xf32>
    %18 = arith.maximumf %16, %17 : vector<32x512xf32>
    %c2 = arith.constant 2 : index
    %c0_15 = arith.constant 0 : index
    %c0_16 = arith.constant 0 : index
    %19 = vector.load %arg2[%c2, %c0_15, %c0_16] : memref<7x32x32xf32, #tpu.memory_space<vmem>>, vector<1x32x32xf32>
    %20 = vector.shape_cast %19 : vector<1x32x32xf32> to vector<32x32xf32>
    %cst_17 = arith.constant dense<0.000000e+00> : vector<32x512xf32>
    %21 = tpu.matmul %20, %18, %cst_17 {dimension_numbers = #tpu.dot_dimension_numbers<[1], [0], [0], [1], [0, 0, 1, 1], [], []>} : vector<32x32xf32>, vector<32x512xf32>, vector<32x512xf32> -> vector<32x512xf32>
    %c2_18 = arith.constant 2 : index
    %c0_19 = arith.constant 0 : index
    %c0_20 = arith.constant 0 : index
    %22 = vector.load %arg3[%c2_18, %c0_19, %c0_20] : memref<6x32x1xf32, #tpu.memory_space<vmem>>, vector<1x32x1xf32>
    %23 = vector.shape_cast %22 : vector<1x32x1xf32> to vector<32x1xf32>
    %24 = vector.broadcast %23 : vector<32x1xf32> to vector<32x512xf32>
    %25 = arith.addf %21, %24 : vector<32x512xf32>
    %cst_21 = arith.constant 0.000000e+00 : f32
    %26 = vector.broadcast %cst_21 : f32 to vector<32x512xf32>
    %27 = arith.maximumf %25, %26 : vector<32x512xf32>
    %c3 = arith.constant 3 : index
    %c0_22 = arith.constant 0 : index
    %c0_23 = arith.constant 0 : index
    %28 = vector.load %arg2[%c3, %c0_22, %c0_23] : memref<7x32x32xf32, #tpu.memory_space<vmem>>, vector<1x32x32xf32>
    %29 = vector.shape_cast %28 : vector<1x32x32xf32> to vector<32x32xf32>
    %cst_24 = arith.constant dense<0.000000e+00> : vector<32x512xf32>
    %30 = tpu.matmul %29, %27, %cst_24 {dimension_numbers = #tpu.dot_dimension_numbers<[1], [0], [0], [1], [0, 0, 1, 1], [], []>} : vector<32x32xf32>, vector<32x512xf32>, vector<32x512xf32> -> vector<32x512xf32>
    %c3_25 = arith.constant 3 : index
    %c0_26 = arith.constant 0 : index
    %c0_27 = arith.constant 0 : index
    %31 = vector.load %arg3[%c3_25, %c0_26, %c0_27] : memref<6x32x1xf32, #tpu.memory_space<vmem>>, vector<1x32x1xf32>
    %32 = vector.shape_cast %31 : vector<1x32x1xf32> to vector<32x1xf32>
    %33 = vector.broadcast %32 : vector<32x1xf32> to vector<32x512xf32>
    %34 = arith.addf %30, %33 : vector<32x512xf32>
    %cst_28 = arith.constant 0.000000e+00 : f32
    %35 = vector.broadcast %cst_28 : f32 to vector<32x512xf32>
    %36 = arith.maximumf %34, %35 : vector<32x512xf32>
    %c4 = arith.constant 4 : index
    %c0_29 = arith.constant 0 : index
    %c0_30 = arith.constant 0 : index
    %37 = vector.load %arg2[%c4, %c0_29, %c0_30] : memref<7x32x32xf32, #tpu.memory_space<vmem>>, vector<1x32x32xf32>
    %38 = vector.shape_cast %37 : vector<1x32x32xf32> to vector<32x32xf32>
    %cst_31 = arith.constant dense<0.000000e+00> : vector<32x512xf32>
    %39 = tpu.matmul %38, %36, %cst_31 {dimension_numbers = #tpu.dot_dimension_numbers<[1], [0], [0], [1], [0, 0, 1, 1], [], []>} : vector<32x32xf32>, vector<32x512xf32>, vector<32x512xf32> -> vector<32x512xf32>
    %c6 = arith.constant 6 : index
    %c0_32 = arith.constant 0 : index
    %c0_33 = arith.constant 0 : index
    %40 = vector.load %arg2[%c6, %c0_32, %c0_33] : memref<7x32x32xf32, #tpu.memory_space<vmem>>, vector<1x32x32xf32>
    %41 = vector.shape_cast %40 : vector<1x32x32xf32> to vector<32x32xf32>
    %cst_34 = arith.constant dense<0.000000e+00> : vector<32x512xf32>
    %42 = tpu.matmul %41, %0, %cst_34 {dimension_numbers = #tpu.dot_dimension_numbers<[1], [0], [0], [1], [0, 0, 1, 1], [], []>} : vector<32x32xf32>, vector<32x512xf32>, vector<32x512xf32> -> vector<32x512xf32>
    %43 = arith.addf %39, %42 : vector<32x512xf32>
    %c4_35 = arith.constant 4 : index
    %c0_36 = arith.constant 0 : index
    %c0_37 = arith.constant 0 : index
    %44 = vector.load %arg3[%c4_35, %c0_36, %c0_37] : memref<6x32x1xf32, #tpu.memory_space<vmem>>, vector<1x32x1xf32>
    %45 = vector.shape_cast %44 : vector<1x32x1xf32> to vector<32x1xf32>
    %46 = vector.broadcast %45 : vector<32x1xf32> to vector<32x512xf32>
    %47 = arith.addf %43, %46 : vector<32x512xf32>
    %cst_38 = arith.constant 0.000000e+00 : f32
    %48 = vector.broadcast %cst_38 : f32 to vector<32x512xf32>
    %49 = arith.maximumf %47, %48 : vector<32x512xf32>
    %c5 = arith.constant 5 : index
    %c0_39 = arith.constant 0 : index
    %c0_40 = arith.constant 0 : index
    %50 = vector.load %arg2[%c5, %c0_39, %c0_40] : memref<7x32x32xf32, #tpu.memory_space<vmem>>, vector<1x32x32xf32>
    %51 = vector.shape_cast %50 : vector<1x32x32xf32> to vector<32x32xf32>
    %cst_41 = arith.constant dense<0.000000e+00> : vector<32x512xf32>
    %52 = tpu.matmul %51, %49, %cst_41 {dimension_numbers = #tpu.dot_dimension_numbers<[1], [0], [0], [1], [0, 0, 1, 1], [], []>} : vector<32x32xf32>, vector<32x512xf32>, vector<32x512xf32> -> vector<32x512xf32>
    %c5_42 = arith.constant 5 : index
    %c0_43 = arith.constant 0 : index
    %c0_44 = arith.constant 0 : index
    %53 = vector.load %arg3[%c5_42, %c0_43, %c0_44] : memref<6x32x1xf32, #tpu.memory_space<vmem>>, vector<1x32x1xf32>
    %54 = vector.shape_cast %53 : vector<1x32x1xf32> to vector<32x1xf32>
    %55 = vector.broadcast %54 : vector<32x1xf32> to vector<32x512xf32>
    %56 = arith.addf %52, %55 : vector<32x512xf32>
    %57 = vector.extract_strided_slice %56 {offsets = [0, 0], sizes = [3, 512], strides = [1, 1]} : vector<32x512xf32> to vector<3x512xf32>
    %58 = math.tanh %57 : vector<3x512xf32>
    %c0_45 = arith.constant 0 : index
    %c0_46 = arith.constant 0 : index
    %59 = vector.load %arg4[%c0_45, %c0_46] : memref<3x512xf32, #tpu.memory_space<vmem>>, vector<3x512xf32>
    tpu.vector_store %arg4[%c0_45, %c0_46], %58 {strides = array<i32>} : memref<3x512xf32, #tpu.memory_space<vmem>>, vector<3x512xf32>,
    return
  }
  func.func @transform_0(%arg0: i32) -> (i32, i32) {
    %c0_i32 = arith.constant 0 : i32
    %c0_i32_0 = arith.constant 0 : i32
    return %c0_i32, %arg0 : i32, i32
  }
  func.func @transform_1(%arg0: i32) -> (i32, i32, i32) {
    %c0_i32 = arith.constant 0 : i32
    %c0_i32_0 = arith.constant 0 : i32
    %c0_i32_1 = arith.constant 0 : i32
    %c0_i32_2 = arith.constant 0 : i32
    return %c0_i32, %c0_i32_0, %c0_i32_1 : i32, i32, i32
  }
  func.func @transform_2(%arg0: i32) -> (i32, i32, i32) {
    %c0_i32 = arith.constant 0 : i32
    %c0_i32_0 = arith.constant 0 : i32
    %c0_i32_1 = arith.constant 0 : i32
    %c0_i32_2 = arith.constant 0 : i32
    return %c0_i32, %c0_i32_0, %c0_i32_1 : i32, i32, i32
  }
  func.func @transform_3(%arg0: i32) -> (i32, i32) {
    %c0_i32 = arith.constant 0 : i32
    %c0_i32_0 = arith.constant 0 : i32
    return %c0_i32, %arg0 : i32, i32
  }
}

</mosaic_0001>

<llo_original>
// kernel: tpu_custom_call.1
$region0: #{tpu_custom_call.1}
  #allocation0 [shape = 'u32[]', space=smem, size = 0x4, offset = 0x4, fixed_abs, tag = 'smem constant byte address 0x4 - core index']
  #allocation1 [shape = 'u32[144,128]{1,0:T(1,128)}', space=vmem, size = 0x12000, scoped, tag = 'internal scratch']
  %s0 = inlined_call_operand.vmem [shape: f32[32,512], index: 0, kind: input, shape index: {}]
  %s1 = inlined_call_operand.hbm [shape: f32[7,32,32], index: 1, kind: input, shape index: {}]
  %s2 = inlined_call_operand.vmem [shape: f32[6,32,1], index: 2, kind: input, shape index: {}]
  %s3 = inlined_call_operand.hbm [shape: f32[3,512], index: 3, kind: output, shape index: {}]
  %s4 = sld [smem:[#allocation0]]
  $region26: #{tpu_custom_call.1} parent=0
    _
  %s6 = ssub.s32 1, %s4
  %s7 = scalar_select 0, %s6, %s4
  $region1: #{tpu_custom_call.1} parent=0
    #allocation2 [shape = 'u8[114688]{0}', space=vmem, size = 0x1c000, scoped, tag = 'input window, operand 1, single buffered']
    #allocation3 [shape = 's32[1]{0}', space=sflag, size = 0x4, scoped, tag = 'scoped memory for tpu_custom_call.1']
    #allocation4 [shape = 's32[1]{0}', space=sflag, size = 0x4, scoped, tag = 'scoped memory for tpu_custom_call.1']
    #allocation5 [shape = 'u8[8192]{0}', space=vmem, size = 0x2000, scoped, tag = 'output window, operand 0, single buffered']
    %8 = vsyncpa [#allocation3], 0
    %9 = vsyncpa [#allocation4], 0
    // Predicated region
    $region2: #{tpu_custom_call.1} parent=1 // pred_check
      _
    $region3: #{tpu_custom_call.1} parent=1 // pred_check_branch
      %11 = sbr.rel (0) target = $region5
    $region4: #{tpu_custom_call.1} parent=1 // pred_region
      _
    $region5: #{tpu_custom_call.1} parent=1 // pred_fallthru
      _
    // Predicated region
    $region6: #{tpu_custom_call.1} parent=1 // pred_check
      _
    $region7: #{tpu_custom_call.1} parent=1 // pred_check_branch
      %13 = sbr.rel (0) target = $region9
    $region8: #{tpu_custom_call.1} parent=1 // pred_region
      %s15 = ssub.s32 3584, 3584
      %16 = vsyncadd [#allocation3], %s15
      %s17 = sshll.u32 [#allocation2], 4
      %s18 = int_to_ptr.vmem [resolvable:$true] %s17
      %23 = dma.hbm_to_vmem [thread:$0]  %s1, 3584, %s18, [#allocation3], 128, 128, 8
    $region9: #{tpu_custom_call.1} parent=1 // pred_fallthru
      _
    // Predicated region
    $region10: #{tpu_custom_call.1} parent=1 // pred_check
      _
    $region11: #{tpu_custom_call.1} parent=1 // pred_check_branch
      %25 = sbr.rel (0) target = $region13
    $region12: #{tpu_custom_call.1} parent=1 // pred_region
      _
    $region13: #{tpu_custom_call.1} parent=1 // pred_fallthru
      _
    // Predicated region
    $region14: #{tpu_custom_call.1} parent=1 // pred_check
      _
    $region15: #{tpu_custom_call.1} parent=1 // pred_check_branch
      %27 = sbr.rel (0) target = $region17
    $region16: #{tpu_custom_call.1} parent=1 // pred_region
      %28 = dma.done [#allocation3], 3584
    $region17: #{tpu_custom_call.1} parent=1 // pred_fallthru
      _
    %v29 = vld [vmem:[%s0] sm:$0xff]
    %v30 = vld [vmem:[%s0 + $0x8] sm:$0xff]
    %v31 = vld [vmem:[%s0 + $0x10] sm:$0xff]
    %v32 = vld [vmem:[%s0 + $0x18] sm:$0xff]
    %v33 = vld [vmem:[%s0 + $0x20] sm:$0xff]
    %v34 = vld [vmem:[%s0 + $0x28] sm:$0xff]
    %v35 = vld [vmem:[%s0 + $0x30] sm:$0xff]
    %v36 = vld [vmem:[%s0 + $0x38] sm:$0xff]
    %v37 = vld [vmem:[%s0 + $0x40] sm:$0xff]
    %v38 = vld [vmem:[%s0 + $0x48] sm:$0xff]
    %v39 = vld [vmem:[%s0 + $0x50] sm:$0xff]
    %v40 = vld [vmem:[%s0 + $0x58] sm:$0xff]
    %v41 = vld [vmem:[%s0 + $0x60] sm:$0xff]
    %v42 = vld [vmem:[%s0 + $0x68] sm:$0xff]
    %v43 = vld [vmem:[%s0 + $0x70] sm:$0xff]
    %v44 = vld [vmem:[%s0 + $0x78] sm:$0xff]
    %v45 = vld [vmem:[#allocation2] sm:$0xff]
    %v46 = vld [vmem:[#allocation2 + $0x8] sm:$0xff]
    %v47 = vld [vmem:[#allocation2 + $0x10] sm:$0xff]
    %v48 = vld [vmem:[#allocation2 + $0x18] sm:$0xff]
    %v49 = vld [vmem:[%s2] sm:$0xff]
    %v50 = vld [vmem:[%s2 + $0x8] sm:$0xff]
    %v51 = vld [vmem:[%s2 + $0x10] sm:$0xff]
    %v52 = vld [vmem:[%s2 + $0x18] sm:$0xff]
    %54 = vset.pattern.permute.xlu0 0
    %55 = vperm.xlu0 %54, %v49
    %v56 = vpop.permute.xlu0 %55
    %59 = vset.pattern.permute.xlu0 0
    %60 = vperm.xlu0 %59, %v50
    %v61 = vpop.permute.xlu0 %60
    %64 = vset.pattern.permute.xlu0 0
    %65 = vperm.xlu0 %64, %v51
    %v66 = vpop.permute.xlu0 %65
    %69 = vset.pattern.permute.xlu0 0
    %70 = vperm.xlu0 %69, %v52
    %v71 = vpop.permute.xlu0 %70
    %vm73 = vcmask 261120
    %v75 = vsel %vm73, %v45, 0
    %v78 = vsel %vm73, %v46, 0
    %v81 = vsel %vm73, %v47, 0
    %v84 = vsel %vm73, %v48, 0
    %86 = vmatprep.subr.mxu0 0.0
    %87 = vmatpush1.msra.mxu0 0.0
    %88 = vmatprep.subr.mxu0 0.0
    %89 = vmatpush1.msra.mxu0 0.0
    %90 = vmatprep.subr.mxu0 0.0
    %91 = vmatpush1.msra.mxu0 0.0
    %92 = vmatprep.subr.mxu0 0.0
    %93 = vmatpush1.msra.mxu0 0.0
    %94 = vmatprep.subr.mxu0 0.0
    %95 = vmatpush1.msra.mxu0 0.0
    %96 = vmatprep.subr.mxu0 0.0
    %97 = vmatpush1.msra.mxu0 0.0
    %98 = vmatprep.subr.mxu0 0.0
    %99 = vmatpush1.msra.mxu0 0.0
    %100 = vmatprep.subr.mxu0 0.0
    %101 = vmatpush1.msra.mxu0 0.0
    %102 = vmatprep.subr.mxu0 0.0
    %103 = vmatpush1.msra.mxu0 0.0
    %104 = vmatprep.subr.mxu0 0.0
    %105 = vmatpush1.msra.mxu0 0.0
    %106 = vmatprep.subr.mxu0 0.0
    %107 = vmatpush1.msra.mxu0 0.0
    %108 = vmatprep.subr.mxu0 0.0
    %109 = vmatpush1.msra.mxu0 0.0
    %110 = vmatprep.subr.mxu0 %v42
    %111 = vmatpush1.msra.mxu0 %v41
    %112 = vmatprep.subr.mxu0 %v38
    %113 = vmatpush1.msra.mxu0 %v37
    %114 = vmatprep.subr.mxu0 %v34
    %115 = vmatpush1.msra.mxu0 %v33
    %116 = vmatprep.subr.mxu0 %v30
    %117 = vmatpush1.msra.mxu0 %v29
    %118 = vmatprep.subr.mxu0 0.0
    %119 = vmatpush2.msra.mxu0 0.0
    %120 = vmatprep.subr.mxu0 0.0
    %121 = vmatpush2.msra.mxu0 0.0
    %122 = vmatprep.subr.mxu0 0.0
    %123 = vmatpush2.msra.mxu0 0.0
    %124 = vmatprep.subr.mxu0 0.0
    %125 = vmatpush2.msra.mxu0 0.0
    %126 = vmatprep.subr.mxu0 0.0
    %127 = vmatpush2.msra.mxu0 0.0
    %128 = vmatprep.subr.mxu0 0.0
    %129 = vmatpush2.msra.mxu0 0.0
    %130 = vmatprep.subr.mxu0 0.0
    %131 = vmatpush2.msra.mxu0 0.0
    %132 = vmatprep.subr.mxu0 0.0
    %133 = vmatpush2.msra.mxu0 0.0
    %134 = vmatprep.subr.mxu0 0.0
    %135 = vmatpush2.msra.mxu0 0.0
    %136 = vmatprep.subr.mxu0 0.0
    %137 = vmatpush2.msra.mxu0 0.0
    %138 = vmatprep.subr.mxu0 0.0
    %139 = vmatpush2.msra.mxu0 0.0
    %140 = vmatprep.subr.mxu0 0.0
    %141 = vmatpush2.msra.mxu0 0.0
    %142 = vmatprep.subr.mxu0 0.0
    %143 = vmatpush2.msra.mxu0 0.0
    %144 = vmatprep.subr.mxu0 0.0
    %145 = vmatpush2.msra.mxu0 0.0
    %146 = vmatprep.subr.mxu0 0.0
    %147 = vmatpush2.msra.mxu0 0.0
    %148 = vmatprep.subr.mxu0 0.0
    %149 = vmatpush2.msra.mxu0 0.0
    %150 = vmatprep.mubr.f32.mxu0 0.0
    %151 = vmatmul.mubr.f32.gmra.mxu0 %v75
    %v152 = vpop.f32.mrf.mxu0
    %v153 = vadd.f32 %v56, %v152
    %v154 = vpop.f32.mrf.mxu0
    %v155 = vadd.f32 %v56, %v154
    %156 = vmatprep.mubr.f32.mxu0 0.0
    %157 = vmatmul.mubr.f32.gmra.mxu0 %v78
    %v158 = vpop.f32.mrf.mxu0
    %v159 = vadd.f32 %v61, %v158
    %v160 = vpop.f32.mrf.mxu0
    %v161 = vadd.f32 %v61, %v160
    %162 = vmatprep.mubr.f32.mxu0 0.0
    %163 = vmatmul.mubr.f32.gmra.mxu0 %v81
    %v164 = vpop.f32.mrf.mxu0
    %v165 = vadd.f32 %v66, %v164
    %v166 = vpop.f32.mrf.mxu0
    %v167 = vadd.f32 %v66, %v166
    %168 = vmatprep.mubr.f32.mxu0 0.0
    %169 = vmatmul.mubr.f32.gmra.mxu0 %v84
    %v170 = vpop.f32.mrf.mxu0
    %v171 = vadd.f32 %v71, %v170
    %v172 = vpop.f32.mrf.mxu0
    %v173 = vadd.f32 %v71, %v172
    %174 = vdwg.mxu0
    %175 = vmatprep.subr.mxu0 0.0
    %176 = vmatpush1.msra.mxu0 0.0
    %177 = vmatprep.subr.mxu0 0.0
    %178 = vmatpush1.msra.mxu0 0.0
    %179 = vmatprep.subr.mxu0 0.0
    %180 = vmatpush1.msra.mxu0 0.0
    %181 = vmatprep.subr.mxu0 0.0
    %182 = vmatpush1.msra.mxu0 0.0
    %183 = vmatprep.subr.mxu0 0.0
    %184 = vmatpush1.msra.mxu0 0.0
    %185 = vmatprep.subr.mxu0 0.0
    %186 = vmatpush1.msra.mxu0 0.0
    %187 = vmatprep.subr.mxu0 0.0
    %188 = vmatpush1.msra.mxu0 0.0
    %189 = vmatprep.subr.mxu0 0.0
    %190 = vmatpush1.msra.mxu0 0.0
    %191 = vmatprep.subr.mxu0 0.0
    %192 = vmatpush1.msra.mxu0 0.0
    %193 = vmatprep.subr.mxu0 0.0
    %194 = vmatpush1.msra.mxu0 0.0
    %195 = vmatprep.subr.mxu0 0.0
    %196 = vmatpush1.msra.mxu0 0.0
    %197 = vmatprep.subr.mxu0 0.0
    %198 = vmatpush1.msra.mxu0 0.0
    %199 = vmatprep.subr.mxu0 %v44
    %200 = vmatpush1.msra.mxu0 %v43
    %201 = vmatprep.subr.mxu0 %v40
    %202 = vmatpush1.msra.mxu0 %v39
    %203 = vmatprep.subr.mxu0 %v36
    %204 = vmatpush1.msra.mxu0 %v35
    %205 = vmatprep.subr.mxu0 %v32
    %206 = vmatpush1.msra.mxu0 %v31
    %207 = vmatprep.subr.mxu0 0.0
    %208 = vmatpush2.msra.mxu0 0.0
    %209 = vmatprep.subr.mxu0 0.0
    %210 = vmatpush2.msra.mxu0 0.0
    %211 = vmatprep.subr.mxu0 0.0
    %212 = vmatpush2.msra.mxu0 0.0
    %213 = vmatprep.subr.mxu0 0.0
    %214 = vmatpush2.msra.mxu0 0.0
    %215 = vmatprep.subr.mxu0 0.0
    %216 = vmatpush2.msra.mxu0 0.0
    %217 = vmatprep.subr.mxu0 0.0
    %218 = vmatpush2.msra.mxu0 0.0
    %219 = vmatprep.subr.mxu0 0.0
    %220 = vmatpush2.msra.mxu0 0.0
    %221 = vmatprep.subr.mxu0 0.0
    %222 = vmatpush2.msra.mxu0 0.0
    %223 = vmatprep.subr.mxu0 0.0
    %224 = vmatpush2.msra.mxu0 0.0
    %225 = vmatprep.subr.mxu0 0.0
    %226 = vmatpush2.msra.mxu0 0.0
    %227 = vmatprep.subr.mxu0 0.0
    %228 = vmatpush2.msra.mxu0 0.0
    %229 = vmatprep.subr.mxu0 0.0
    %230 = vmatpush2.msra.mxu0 0.0
    %231 = vmatprep.subr.mxu0 0.0
    %232 = vmatpush2.msra.mxu0 0.0
    %233 = vmatprep.subr.mxu0 0.0
    %234 = vmatpush2.msra.mxu0 0.0
    %235 = vmatprep.subr.mxu0 0.0
    %236 = vmatpush2.msra.mxu0 0.0
    %237 = vmatprep.subr.mxu0 0.0
    %238 = vmatpush2.msra.mxu0 0.0
    %239 = vmatprep.mubr.f32.mxu0 0.0
    %240 = vmatmul.mubr.f32.gmra.mxu0 %v75
    %v241 = vpop.f32.mrf.mxu0
    %v242 = vadd.f32 %v56, %v241
    %v243 = vpop.f32.mrf.mxu0
    %v244 = vadd.f32 %v56, %v243
    %245 = vmatprep.mubr.f32.mxu0 0.0
    %246 = vmatmul.mubr.f32.gmra.mxu0 %v78
    %v247 = vpop.f32.mrf.mxu0
    %v248 = vadd.f32 %v61, %v247
    %v249 = vpop.f32.mrf.mxu0
    %v250 = vadd.f32 %v61, %v249
    %251 = vmatprep.mubr.f32.mxu0 0.0
    %252 = vmatmul.mubr.f32.gmra.mxu0 %v81
    %v253 = vpop.f32.mrf.mxu0
    %v254 = vadd.f32 %v66, %v253
    %v255 = vpop.f32.mrf.mxu0
    %v256 = vadd.f32 %v66, %v255
    %257 = vmatprep.mubr.f32.mxu0 0.0
    %258 = vmatmul.mubr.f32.gmra.mxu0 %v84
    %v259 = vpop.f32.mrf.mxu0
    %v260 = vadd.f32 %v71, %v259
    %v261 = vpop.f32.mrf.mxu0
    %v262 = vadd.f32 %v71, %v261
    %263 = vdwg.mxu0
    %v264 = vmax.f32 %v153, 0.0
    %v265 = vmax.f32 %v155, 0.0
    %v266 = vmax.f32 %v242, 0.0
    %v267 = vmax.f32 %v244, 0.0
    %v268 = vmax.f32 %v159, 0.0
    %v269 = vmax.f32 %v161, 0.0
    %v270 = vmax.f32 %v248, 0.0
    %v271 = vmax.f32 %v250, 0.0
    %v272 = vmax.f32 %v165, 0.0
    %v273 = vmax.f32 %v167, 0.0
    %v274 = vmax.f32 %v254, 0.0
    %v275 = vmax.f32 %v256, 0.0
    %v276 = vmax.f32 %v171, 0.0
    %v277 = vmax.f32 %v173, 0.0
    %v278 = vmax.f32 %v260, 0.0
    %v279 = vmax.f32 %v262, 0.0
    %s280 = scalar_lea.vmem [#allocation2], 32
    %v281 = vld [vmem:[%s280] sm:$0xff]
    %v282 = vld [vmem:[%s280 + $0x8] sm:$0xff]
    %v283 = vld [vmem:[%s280 + $0x10] sm:$0xff]
    %v284 = vld [vmem:[%s280 + $0x18] sm:$0xff]
    %s285 = scalar_lea.vmem %s2, 32
    %v286 = vld [vmem:[%s285] sm:$0xff]
    %v287 = vld [vmem:[%s285 + $0x8] sm:$0xff]
    %v288 = vld [vmem:[%s285 + $0x10] sm:$0xff]
    %v289 = vld [vmem:[%s285 + $0x18] sm:$0xff]
    %291 = vset.pattern.permute.xlu0 0
    %292 = vperm.xlu0 %291, %v286
    %v293 = vpop.permute.xlu0 %292
    %296 = vset.pattern.permute.xlu0 0
    %297 = vperm.xlu0 %296, %v287
    %v298 = vpop.permute.xlu0 %297
    %301 = vset.pattern.permute.xlu0 0
    %302 = vperm.xlu0 %301, %v288
    %v303 = vpop.permute.xlu0 %302
    %306 = vset.pattern.permute.xlu0 0
    %307 = vperm.xlu0 %306, %v289
    %v308 = vpop.permute.xlu0 %307
    %v311 = vsel %vm73, %v281, 0
    %v314 = vsel %vm73, %v282, 0
    %v317 = vsel %vm73, %v283, 0
    %v320 = vsel %vm73, %v284, 0
    %322 = vmatprep.subr.mxu0 0.0
    %323 = vmatpush1.msra.mxu0 0.0
    %324 = vmatprep.subr.mxu0 0.0
    %325 = vmatpush1.msra.mxu0 0.0
    %326 = vmatprep.subr.mxu0 0.0
    %327 = vmatpush1.msra.mxu0 0.0
    %328 = vmatprep.subr.mxu0 0.0
    %329 = vmatpush1.msra.mxu0 0.0
    %330 = vmatprep.subr.mxu0 0.0
    %331 = vmatpush1.msra.mxu0 0.0
    %332 = vmatprep.subr.mxu0 0.0
    %333 = vmatpush1.msra.mxu0 0.0
    %334 = vmatprep.subr.mxu0 0.0
    %335 = vmatpush1.msra.mxu0 0.0
    %336 = vmatprep.subr.mxu0 0.0
    %337 = vmatpush1.msra.mxu0 0.0
    %338 = vmatprep.subr.mxu0 0.0
    %339 = vmatpush1.msra.mxu0 0.0
    %340 = vmatprep.subr.mxu0 0.0
    %341 = vmatpush1.msra.mxu0 0.0
    %342 = vmatprep.subr.mxu0 0.0
    %343 = vmatpush1.msra.mxu0 0.0
    %344 = vmatprep.subr.mxu0 0.0
    %345 = vmatpush1.msra.mxu0 0.0
    %346 = vmatprep.subr.mxu0 %v277
    %347 = vmatpush1.msra.mxu0 %v276
    %348 = vmatprep.subr.mxu0 %v273
    %349 = vmatpush1.msra.mxu0 %v272
    %350 = vmatprep.subr.mxu0 %v269
    %351 = vmatpush1.msra.mxu0 %v268
    %352 = vmatprep.subr.mxu0 %v265
    %353 = vmatpush1.msra.mxu0 %v264
    %354 = vmatprep.subr.mxu0 0.0
    %355 = vmatpush2.msra.mxu0 0.0
    %356 = vmatprep.subr.mxu0 0.0
    %357 = vmatpush2.msra.mxu0 0.0
    %358 = vmatprep.subr.mxu0 0.0
    %359 = vmatpush2.msra.mxu0 0.0
    %360 = vmatprep.subr.mxu0 0.0
    %361 = vmatpush2.msra.mxu0 0.0
    %362 = vmatprep.subr.mxu0 0.0
    %363 = vmatpush2.msra.mxu0 0.0
    %364 = vmatprep.subr.mxu0 0.0
    %365 = vmatpush2.msra.mxu0 0.0
    %366 = vmatprep.subr.mxu0 0.0
    %367 = vmatpush2.msra.mxu0 0.0
    %368 = vmatprep.subr.mxu0 0.0
    %369 = vmatpush2.msra.mxu0 0.0
    %370 = vmatprep.subr.mxu0 0.0
    %371 = vmatpush2.msra.mxu0 0.0
    %372 = vmatprep.subr.mxu0 0.0
    %373 = vmatpush2.msra.mxu0 0.0
    %374 = vmatprep.subr.mxu0 0.0
    %375 = vmatpush2.msra.mxu0 0.0
    %376 = vmatprep.subr.mxu0 0.0
    %377 = vmatpush2.msra.mxu0 0.0
    %378 = vmatprep.subr.mxu0 0.0
    %379 = vmatpush2.msra.mxu0 0.0
    %380 = vmatprep.subr.mxu0 0.0
    %381 = vmatpush2.msra.mxu0 0.0
    %382 = vmatprep.subr.mxu0 0.0
    %383 = vmatpush2.msra.mxu0 0.0
    %384 = vmatprep.subr.mxu0 0.0
    %385 = vmatpush2.msra.mxu0 0.0
    %386 = vmatprep.mubr.f32.mxu0 0.0
    %387 = vmatmul.mubr.f32.gmra.mxu0 %v311
    %v388 = vpop.f32.mrf.mxu0
    %v389 = vadd.f32 %v293, %v388
    %v390 = vpop.f32.mrf.mxu0
    %v391 = vadd.f32 %v293, %v390
    %392 = vmatprep.mubr.f32.mxu0 0.0
    %393 = vmatmul.mubr.f32.gmra.mxu0 %v314
    %v394 = vpop.f32.mrf.mxu0
    %v395 = vadd.f32 %v298, %v394
    %v396 = vpop.f32.mrf.mxu0
    %v397 = vadd.f32 %v298, %v396
    %398 = vmatprep.mubr.f32.mxu0 0.0
    %399 = vmatmul.mubr.f32.gmra.mxu0 %v317
    %v400 = vpop.f32.mrf.mxu0
    %v401 = vadd.f32 %v303, %v400
    %v402 = vpop.f32.mrf.mxu0
    %v403 = vadd.f32 %v303, %v402
    %404 = vmatprep.mubr.f32.mxu0 0.0
    %405 = vmatmul.mubr.f32.gmra.mxu0 %v320
    %v406 = vpop.f32.mrf.mxu0
    %v407 = vadd.f32 %v308, %v406
    %v408 = vpop.f32.mrf.mxu0
    %v409 = vadd.f32 %v308, %v408
    %410 = vdwg.mxu0
    %411 = vmatprep.subr.mxu0 0.0
    %412 = vmatpush1.msra.mxu0 0.0
    %413 = vmatprep.subr.mxu0 0.0
    %414 = vmatpush1.msra.mxu0 0.0
    %415 = vmatprep.subr.mxu0 0.0
    %416 = vmatpush1.msra.mxu0 0.0
    %417 = vmatprep.subr.mxu0 0.0
    %418 = vmatpush1.msra.mxu0 0.0
    %419 = vmatprep.subr.mxu0 0.0
    %420 = vmatpush1.msra.mxu0 0.0
    %421 = vmatprep.subr.mxu0 0.0
    %422 = vmatpush1.msra.mxu0 0.0
    %423 = vmatprep.subr.mxu0 0.0
    %424 = vmatpush1.msra.mxu0 0.0
    %425 = vmatprep.subr.mxu0 0.0
    %426 = vmatpush1.msra.mxu0 0.0
    %427 = vmatprep.subr.mxu0 0.0
    %428 = vmatpush1.msra.mxu0 0.0
    %429 = vmatprep.subr.mxu0 0.0
    %430 = vmatpush1.msra.mxu0 0.0
    %431 = vmatprep.subr.mxu0 0.0
    %432 = vmatpush1.msra.mxu0 0.0
    %433 = vmatprep.subr.mxu0 0.0
    %434 = vmatpush1.msra.mxu0 0.0
    %435 = vmatprep.subr.mxu0 %v279
    %436 = vmatpush1.msra.mxu0 %v278
    %437 = vmatprep.subr.mxu0 %v275
    %438 = vmatpush1.msra.mxu0 %v274
    %439 = vmatprep.subr.mxu0 %v271
    %440 = vmatpush1.msra.mxu0 %v270
    %441 = vmatprep.subr.mxu0 %v267
    %442 = vmatpush1.msra.mxu0 %v266
    %443 = vmatprep.subr.mxu0 0.0
    %444 = vmatpush2.msra.mxu0 0.0
    %445 = vmatprep.subr.mxu0 0.0
    %446 = vmatpush2.msra.mxu0 0.0
    %447 = vmatprep.subr.mxu0 0.0
    %448 = vmatpush2.msra.mxu0 0.0
    %449 = vmatprep.subr.mxu0 0.0
    %450 = vmatpush2.msra.mxu0 0.0
    %451 = vmatprep.subr.mxu0 0.0
    %452 = vmatpush2.msra.mxu0 0.0
    %453 = vmatprep.subr.mxu0 0.0
    %454 = vmatpush2.msra.mxu0 0.0
    %455 = vmatprep.subr.mxu0 0.0
    %456 = vmatpush2.msra.mxu0 0.0
    %457 = vmatprep.subr.mxu0 0.0
    %458 = vmatpush2.msra.mxu0 0.0
    %459 = vmatprep.subr.mxu0 0.0
    %460 = vmatpush2.msra.mxu0 0.0
    %461 = vmatprep.subr.mxu0 0.0
    %462 = vmatpush2.msra.mxu0 0.0
    %463 = vmatprep.subr.mxu0 0.0
    %464 = vmatpush2.msra.mxu0 0.0
    %465 = vmatprep.subr.mxu0 0.0
    %466 = vmatpush2.msra.mxu0 0.0
    %467 = vmatprep.subr.mxu0 0.0
    %468 = vmatpush2.msra.mxu0 0.0
    %469 = vmatprep.subr.mxu0 0.0
    %470 = vmatpush2.msra.mxu0 0.0
    %471 = vmatprep.subr.mxu0 0.0
    %472 = vmatpush2.msra.mxu0 0.0
    %473 = vmatprep.subr.mxu0 0.0
    %474 = vmatpush2.msra.mxu0 0.0
    %475 = vmatprep.mubr.f32.mxu0 0.0
    %476 = vmatmul.mubr.f32.gmra.mxu0 %v311
    %v477 = vpop.f32.mrf.mxu0
    %v478 = vadd.f32 %v293, %v477
    %v479 = vpop.f32.mrf.mxu0
    %v480 = vadd.f32 %v293, %v479
    %481 = vmatprep.mubr.f32.mxu0 0.0
    %482 = vmatmul.mubr.f32.gmra.mxu0 %v314
    %v483 = vpop.f32.mrf.mxu0
    %v484 = vadd.f32 %v298, %v483
    %v485 = vpop.f32.mrf.mxu0
    %v486 = vadd.f32 %v298, %v485
    %487 = vmatprep.mubr.f32.mxu0 0.0
    %488 = vmatmul.mubr.f32.gmra.mxu0 %v317
    %v489 = vpop.f32.mrf.mxu0
    %v490 = vadd.f32 %v303, %v489
    %v491 = vpop.f32.mrf.mxu0
    %v492 = vadd.f32 %v303, %v491
    %493 = vmatprep.mubr.f32.mxu0 0.0
    %494 = vmatmul.mubr.f32.gmra.mxu0 %v320
    %v495 = vpop.f32.mrf.mxu0
    %v496 = vadd.f32 %v308, %v495
    %v497 = vpop.f32.mrf.mxu0
    %v498 = vadd.f32 %v308, %v497
    %499 = vdwg.mxu0
    %v500 = vmax.f32 %v389, 0.0
    %v501 = vmax.f32 %v391, 0.0
    %v502 = vmax.f32 %v478, 0.0
    %v503 = vmax.f32 %v480, 0.0
    %v504 = vmax.f32 %v395, 0.0
    %v505 = vmax.f32 %v397, 0.0
    %v506 = vmax.f32 %v484, 0.0
    %v507 = vmax.f32 %v486, 0.0
    %v508 = vmax.f32 %v401, 0.0
    %v509 = vmax.f32 %v403, 0.0
    %v510 = vmax.f32 %v490, 0.0
    %v511 = vmax.f32 %v492, 0.0
    %v512 = vmax.f32 %v407, 0.0
    %v513 = vmax.f32 %v409, 0.0
    %v514 = vmax.f32 %v496, 0.0
    %v515 = vmax.f32 %v498, 0.0
    %s516 = scalar_lea.vmem [#allocation2], 64
    %v517 = vld [vmem:[%s516] sm:$0xff]
    %v518 = vld [vmem:[%s516 + $0x8] sm:$0xff]
    %v519 = vld [vmem:[%s516 + $0x10] sm:$0xff]
    %v520 = vld [vmem:[%s516 + $0x18] sm:$0xff]
    %s521 = scalar_lea.vmem %s2, 64
    %v522 = vld [vmem:[%s521] sm:$0xff]
    %v523 = vld [vmem:[%s521 + $0x8] sm:$0xff]
    %v524 = vld [vmem:[%s521 + $0x10] sm:$0xff]
    %v525 = vld [vmem:[%s521 + $0x18] sm:$0xff]
    %527 = vset.pattern.permute.xlu0 0
    %528 = vperm.xlu0 %527, %v522
    %v529 = vpop.permute.xlu0 %528
    %532 = vset.pattern.permute.xlu0 0
    %533 = vperm.xlu0 %532, %v523
    %v534 = vpop.permute.xlu0 %533
    %537 = vset.pattern.permute.xlu0 0
    %538 = vperm.xlu0 %537, %v524
    %v539 = vpop.permute.xlu0 %538
    %542 = vset.pattern.permute.xlu0 0
    %543 = vperm.xlu0 %542, %v525
    %v544 = vpop.permute.xlu0 %543
    %v547 = vsel %vm73, %v517, 0
    %v550 = vsel %vm73, %v518, 0
    %v553 = vsel %vm73, %v519, 0
    %v556 = vsel %vm73, %v520, 0
    %558 = vmatprep.subr.mxu0 0.0
    %559 = vmatpush1.msra.mxu0 0.0
    %560 = vmatprep.subr.mxu0 0.0
    %561 = vmatpush1.msra.mxu0 0.0
    %562 = vmatprep.subr.mxu0 0.0
    %563 = vmatpush1.msra.mxu0 0.0
    %564 = vmatprep.subr.mxu0 0.0
    %565 = vmatpush1.msra.mxu0 0.0
    %566 = vmatprep.subr.mxu0 0.0
    %567 = vmatpush1.msra.mxu0 0.0
    %568 = vmatprep.subr.mxu0 0.0
    %569 = vmatpush1.msra.mxu0 0.0
    %570 = vmatprep.subr.mxu0 0.0
    %571 = vmatpush1.msra.mxu0 0.0
    %572 = vmatprep.subr.mxu0 0.0
    %573 = vmatpush1.msra.mxu0 0.0
    %574 = vmatprep.subr.mxu0 0.0
    %575 = vmatpush1.msra.mxu0 0.0
    %576 = vmatprep.subr.mxu0 0.0
    %577 = vmatpush1.msra.mxu0 0.0
    %578 = vmatprep.subr.mxu0 0.0
    %579 = vmatpush1.msra.mxu0 0.0
    %580 = vmatprep.subr.mxu0 0.0
    %581 = vmatpush1.msra.mxu0 0.0
    %582 = vmatprep.subr.mxu0 %v513
    %583 = vmatpush1.msra.mxu0 %v512
    %584 = vmatprep.subr.mxu0 %v509
    %585 = vmatpush1.msra.mxu0 %v508
    %586 = vmatprep.subr.mxu0 %v505
    %587 = vmatpush1.msra.mxu0 %v504
    %588 = vmatprep.subr.mxu0 %v501
    %589 = vmatpush1.msra.mxu0 %v500
    %590 = vmatprep.subr.mxu0 0.0
    %591 = vmatpush2.msra.mxu0 0.0
    %592 = vmatprep.subr.mxu0 0.0
    %593 = vmatpush2.msra.mxu0 0.0
    %594 = vmatprep.subr.mxu0 0.0
    %595 = vmatpush2.msra.mxu0 0.0
    %596 = vmatprep.subr.mxu0 0.0
    %597 = vmatpush2.msra.mxu0 0.0
    %598 = vmatprep.subr.mxu0 0.0
    %599 = vmatpush2.msra.mxu0 0.0
    %600 = vmatprep.subr.mxu0 0.0
    %601 = vmatpush2.msra.mxu0 0.0
    %602 = vmatprep.subr.mxu0 0.0
    %603 = vmatpush2.msra.mxu0 0.0
    %604 = vmatprep.subr.mxu0 0.0
    %605 = vmatpush2.msra.mxu0 0.0
    %606 = vmatprep.subr.mxu0 0.0
    %607 = vmatpush2.msra.mxu0 0.0
    %608 = vmatprep.subr.mxu0 0.0
    %609 = vmatpush2.msra.mxu0 0.0
    %610 = vmatprep.subr.mxu0 0.0
    %611 = vmatpush2.msra.mxu0 0.0
    %612 = vmatprep.subr.mxu0 0.0
    %613 = vmatpush2.msra.mxu0 0.0
    %614 = vmatprep.subr.mxu0 0.0
    %615 = vmatpush2.msra.mxu0 0.0
    %616 = vmatprep.subr.mxu0 0.0
    %617 = vmatpush2.msra.mxu0 0.0
    %618 = vmatprep.subr.mxu0 0.0
    %619 = vmatpush2.msra.mxu0 0.0
    %620 = vmatprep.subr.mxu0 0.0
    %621 = vmatpush2.msra.mxu0 0.0
    %622 = vmatprep.mubr.f32.mxu0 0.0
    %623 = vmatmul.mubr.f32.gmra.mxu0 %v547
    %v624 = vpop.f32.mrf.mxu0
    %v625 = vadd.f32 %v529, %v624
    %v626 = vpop.f32.mrf.mxu0
    %v627 = vadd.f32 %v529, %v626
    %628 = vmatprep.mubr.f32.mxu0 0.0
    %629 = vmatmul.mubr.f32.gmra.mxu0 %v550
    %v630 = vpop.f32.mrf.mxu0
    %v631 = vadd.f32 %v534, %v630
    %v632 = vpop.f32.mrf.mxu0
    %v633 = vadd.f32 %v534, %v632
    %634 = vmatprep.mubr.f32.mxu0 0.0
    %635 = vmatmul.mubr.f32.gmra.mxu0 %v553
    %v636 = vpop.f32.mrf.mxu0
    %v637 = vadd.f32 %v539, %v636
    %v638 = vpop.f32.mrf.mxu0
    %v639 = vadd.f32 %v539, %v638
    %640 = vmatprep.mubr.f32.mxu0 0.0
    %641 = vmatmul.mubr.f32.gmra.mxu0 %v556
    %v642 = vpop.f32.mrf.mxu0
    %v643 = vadd.f32 %v544, %v642
    %v644 = vpop.f32.mrf.mxu0
    %v645 = vadd.f32 %v544, %v644
    %646 = vdwg.mxu0
    %647 = vmatprep.subr.mxu0 0.0
    %648 = vmatpush1.msra.mxu0 0.0
    %649 = vmatprep.subr.mxu0 0.0
    %650 = vmatpush1.msra.mxu0 0.0
    %651 = vmatprep.subr.mxu0 0.0
    %652 = vmatpush1.msra.mxu0 0.0
    %653 = vmatprep.subr.mxu0 0.0
    %654 = vmatpush1.msra.mxu0 0.0
    %655 = vmatprep.subr.mxu0 0.0
    %656 = vmatpush1.msra.mxu0 0.0
    %657 = vmatprep.subr.mxu0 0.0
    %658 = vmatpush1.msra.mxu0 0.0
    %659 = vmatprep.subr.mxu0 0.0
    %660 = vmatpush1.msra.mxu0 0.0
    %661 = vmatprep.subr.mxu0 0.0
    %662 = vmatpush1.msra.mxu0 0.0
    %663 = vmatprep.subr.mxu0 0.0
    %664 = vmatpush1.msra.mxu0 0.0
    %665 = vmatprep.subr.mxu0 0.0
    %666 = vmatpush1.msra.mxu0 0.0
    %667 = vmatprep.subr.mxu0 0.0
    %668 = vmatpush1.msra.mxu0 0.0
    %669 = vmatprep.subr.mxu0 0.0
    %670 = vmatpush1.msra.mxu0 0.0
    %671 = vmatprep.subr.mxu0 %v515
    %672 = vmatpush1.msra.mxu0 %v514
    %673 = vmatprep.subr.mxu0 %v511
    %674 = vmatpush1.msra.mxu0 %v510
    %675 = vmatprep.subr.mxu0 %v507
    %676 = vmatpush1.msra.mxu0 %v506
    %677 = vmatprep.subr.mxu0 %v503
    %678 = vmatpush1.msra.mxu0 %v502
    %679 = vmatprep.subr.mxu0 0.0
    %680 = vmatpush2.msra.mxu0 0.0
    %681 = vmatprep.subr.mxu0 0.0
    %682 = vmatpush2.msra.mxu0 0.0
    %683 = vmatprep.subr.mxu0 0.0
    %684 = vmatpush2.msra.mxu0 0.0
    %685 = vmatprep.subr.mxu0 0.0
    %686 = vmatpush2.msra.mxu0 0.0
    %687 = vmatprep.subr.mxu0 0.0
    %688 = vmatpush2.msra.mxu0 0.0
    %689 = vmatprep.subr.mxu0 0.0
    %690 = vmatpush2.msra.mxu0 0.0
    %691 = vmatprep.subr.mxu0 0.0
    %692 = vmatpush2.msra.mxu0 0.0
    %693 = vmatprep.subr.mxu0 0.0
    %694 = vmatpush2.msra.mxu0 0.0
    %695 = vmatprep.subr.mxu0 0.0
    %696 = vmatpush2.msra.mxu0 0.0
    %697 = vmatprep.subr.mxu0 0.0
    %698 = vmatpush2.msra.mxu0 0.0
    %699 = vmatprep.subr.mxu0 0.0
    %700 = vmatpush2.msra.mxu0 0.0
    %701 = vmatprep.subr.mxu0 0.0
    %702 = vmatpush2.msra.mxu0 0.0
    %703 = vmatprep.subr.mxu0 0.0
    %704 = vmatpush2.msra.mxu0 0.0
    %705 = vmatprep.subr.mxu0 0.0
    %706 = vmatpush2.msra.mxu0 0.0
    %707 = vmatprep.subr.mxu0 0.0
    %708 = vmatpush2.msra.mxu0 0.0
    %709 = vmatprep.subr.mxu0 0.0
    %710 = vmatpush2.msra.mxu0 0.0
    %711 = vmatprep.mubr.f32.mxu0 0.0
    %712 = vmatmul.mubr.f32.gmra.mxu0 %v547
    %v713 = vpop.f32.mrf.mxu0
    %v714 = vadd.f32 %v529, %v713
    %v715 = vpop.f32.mrf.mxu0
    %v716 = vadd.f32 %v529, %v715
    %717 = vmatprep.mubr.f32.mxu0 0.0
    %718 = vmatmul.mubr.f32.gmra.mxu0 %v550
    %v719 = vpop.f32.mrf.mxu0
    %v720 = vadd.f32 %v534, %v719
    %v721 = vpop.f32.mrf.mxu0
    %v722 = vadd.f32 %v534, %v721
    %723 = vmatprep.mubr.f32.mxu0 0.0
    %724 = vmatmul.mubr.f32.gmra.mxu0 %v553
    %v725 = vpop.f32.mrf.mxu0
    %v726 = vadd.f32 %v539, %v725
    %v727 = vpop.f32.mrf.mxu0
    %v728 = vadd.f32 %v539, %v727
    %729 = vmatprep.mubr.f32.mxu0 0.0
    %730 = vmatmul.mubr.f32.gmra.mxu0 %v556
    %v731 = vpop.f32.mrf.mxu0
    %v732 = vadd.f32 %v544, %v731
    %v733 = vpop.f32.mrf.mxu0
    %v734 = vadd.f32 %v544, %v733
    %735 = vdwg.mxu0
    %v736 = vmax.f32 %v625, 0.0
    %v737 = vmax.f32 %v627, 0.0
    %v738 = vmax.f32 %v714, 0.0
    %v739 = vmax.f32 %v716, 0.0
    %v740 = vmax.f32 %v631, 0.0
    %v741 = vmax.f32 %v633, 0.0
    %v742 = vmax.f32 %v720, 0.0
    %v743 = vmax.f32 %v722, 0.0
    %v744 = vmax.f32 %v637, 0.0
    %v745 = vmax.f32 %v639, 0.0
    %v746 = vmax.f32 %v726, 0.0
    %v747 = vmax.f32 %v728, 0.0
    %v748 = vmax.f32 %v643, 0.0
    %v749 = vmax.f32 %v645, 0.0
    %v750 = vmax.f32 %v732, 0.0
    %v751 = vmax.f32 %v734, 0.0
    %s752 = scalar_lea.vmem [#allocation2], 96
    %v753 = vld [vmem:[%s752] sm:$0xff]
    %v754 = vld [vmem:[%s752 + $0x8] sm:$0xff]
    %v755 = vld [vmem:[%s752 + $0x10] sm:$0xff]
    %v756 = vld [vmem:[%s752 + $0x18] sm:$0xff]
    %s757 = scalar_lea.vmem %s2, 96
    %v758 = vld [vmem:[%s757] sm:$0xff]
    %v759 = vld [vmem:[%s757 + $0x8] sm:$0xff]
    %v760 = vld [vmem:[%s757 + $0x10] sm:$0xff]
    %v761 = vld [vmem:[%s757 + $0x18] sm:$0xff]
    %763 = vset.pattern.permute.xlu0 0
    %764 = vperm.xlu0 %763, %v758
    %v765 = vpop.permute.xlu0 %764
    %768 = vset.pattern.permute.xlu0 0
    %769 = vperm.xlu0 %768, %v759
    %v770 = vpop.permute.xlu0 %769
    %773 = vset.pattern.permute.xlu0 0
    %774 = vperm.xlu0 %773, %v760
    %v775 = vpop.permute.xlu0 %774
    %778 = vset.pattern.permute.xlu0 0
    %779 = vperm.xlu0 %778, %v761
    %v780 = vpop.permute.xlu0 %779
    %v783 = vsel %vm73, %v753, 0
    %v786 = vsel %vm73, %v754, 0
    %v789 = vsel %vm73, %v755, 0
    %v792 = vsel %vm73, %v756, 0
    %794 = vmatprep.subr.mxu0 0.0
    %795 = vmatpush1.msra.mxu0 0.0
    %796 = vmatprep.subr.mxu0 0.0
    %797 = vmatpush1.msra.mxu0 0.0
    %798 = vmatprep.subr.mxu0 0.0
    %799 = vmatpush1.msra.mxu0 0.0
    %800 = vmatprep.subr.mxu0 0.0
    %801 = vmatpush1.msra.mxu0 0.0
    %802 = vmatprep.subr.mxu0 0.0
    %803 = vmatpush1.msra.mxu0 0.0
    %804 = vmatprep.subr.mxu0 0.0
    %805 = vmatpush1.msra.mxu0 0.0
    %806 = vmatprep.subr.mxu0 0.0
    %807 = vmatpush1.msra.mxu0 0.0
    %808 = vmatprep.subr.mxu0 0.0
    %809 = vmatpush1.msra.mxu0 0.0
    %810 = vmatprep.subr.mxu0 0.0
    %811 = vmatpush1.msra.mxu0 0.0
    %812 = vmatprep.subr.mxu0 0.0
    %813 = vmatpush1.msra.mxu0 0.0
    %814 = vmatprep.subr.mxu0 0.0
    %815 = vmatpush1.msra.mxu0 0.0
    %816 = vmatprep.subr.mxu0 0.0
    %817 = vmatpush1.msra.mxu0 0.0
    %818 = vmatprep.subr.mxu0 %v749
    %819 = vmatpush1.msra.mxu0 %v748
    %820 = vmatprep.subr.mxu0 %v745
    %821 = vmatpush1.msra.mxu0 %v744
    %822 = vmatprep.subr.mxu0 %v741
    %823 = vmatpush1.msra.mxu0 %v740
    %824 = vmatprep.subr.mxu0 %v737
    %825 = vmatpush1.msra.mxu0 %v736
    %826 = vmatprep.subr.mxu0 0.0
    %827 = vmatpush2.msra.mxu0 0.0
    %828 = vmatprep.subr.mxu0 0.0
    %829 = vmatpush2.msra.mxu0 0.0
    %830 = vmatprep.subr.mxu0 0.0
    %831 = vmatpush2.msra.mxu0 0.0
    %832 = vmatprep.subr.mxu0 0.0
    %833 = vmatpush2.msra.mxu0 0.0
    %834 = vmatprep.subr.mxu0 0.0
    %835 = vmatpush2.msra.mxu0 0.0
    %836 = vmatprep.subr.mxu0 0.0
    %837 = vmatpush2.msra.mxu0 0.0
    %838 = vmatprep.subr.mxu0 0.0
    %839 = vmatpush2.msra.mxu0 0.0
    %840 = vmatprep.subr.mxu0 0.0
    %841 = vmatpush2.msra.mxu0 0.0
    %842 = vmatprep.subr.mxu0 0.0
    %843 = vmatpush2.msra.mxu0 0.0
    %844 = vmatprep.subr.mxu0 0.0
    %845 = vmatpush2.msra.mxu0 0.0
    %846 = vmatprep.subr.mxu0 0.0
    %847 = vmatpush2.msra.mxu0 0.0
    %848 = vmatprep.subr.mxu0 0.0
    %849 = vmatpush2.msra.mxu0 0.0
    %850 = vmatprep.subr.mxu0 0.0
    %851 = vmatpush2.msra.mxu0 0.0
    %852 = vmatprep.subr.mxu0 0.0
    %853 = vmatpush2.msra.mxu0 0.0
    %854 = vmatprep.subr.mxu0 0.0
    %855 = vmatpush2.msra.mxu0 0.0
    %856 = vmatprep.subr.mxu0 0.0
    %857 = vmatpush2.msra.mxu0 0.0
    %858 = vmatprep.mubr.f32.mxu0 0.0
    %859 = vmatmul.mubr.f32.gmra.mxu0 %v783
    %v860 = vpop.f32.mrf.mxu0
    %v861 = vadd.f32 %v765, %v860
    %v862 = vpop.f32.mrf.mxu0
    %v863 = vadd.f32 %v765, %v862
    %864 = vmatprep.mubr.f32.mxu0 0.0
    %865 = vmatmul.mubr.f32.gmra.mxu0 %v786
    %v866 = vpop.f32.mrf.mxu0
    %v867 = vadd.f32 %v770, %v866
    %v868 = vpop.f32.mrf.mxu0
    %v869 = vadd.f32 %v770, %v868
    %870 = vmatprep.mubr.f32.mxu0 0.0
    %871 = vmatmul.mubr.f32.gmra.mxu0 %v789
    %v872 = vpop.f32.mrf.mxu0
    %v873 = vadd.f32 %v775, %v872
    %v874 = vpop.f32.mrf.mxu0
    %v875 = vadd.f32 %v775, %v874
    %876 = vmatprep.mubr.f32.mxu0 0.0
    %877 = vmatmul.mubr.f32.gmra.mxu0 %v792
    %v878 = vpop.f32.mrf.mxu0
    %v879 = vadd.f32 %v780, %v878
    %v880 = vpop.f32.mrf.mxu0
    %v881 = vadd.f32 %v780, %v880
    %882 = vdwg.mxu0
    %883 = vmatprep.subr.mxu0 0.0
    %884 = vmatpush1.msra.mxu0 0.0
    %885 = vmatprep.subr.mxu0 0.0
    %886 = vmatpush1.msra.mxu0 0.0
    %887 = vmatprep.subr.mxu0 0.0
    %888 = vmatpush1.msra.mxu0 0.0
    %889 = vmatprep.subr.mxu0 0.0
    %890 = vmatpush1.msra.mxu0 0.0
    %891 = vmatprep.subr.mxu0 0.0
    %892 = vmatpush1.msra.mxu0 0.0
    %893 = vmatprep.subr.mxu0 0.0
    %894 = vmatpush1.msra.mxu0 0.0
    %895 = vmatprep.subr.mxu0 0.0
    %896 = vmatpush1.msra.mxu0 0.0
    %897 = vmatprep.subr.mxu0 0.0
    %898 = vmatpush1.msra.mxu0 0.0
    %899 = vmatprep.subr.mxu0 0.0
    %900 = vmatpush1.msra.mxu0 0.0
    %901 = vmatprep.subr.mxu0 0.0
    %902 = vmatpush1.msra.mxu0 0.0
    %903 = vmatprep.subr.mxu0 0.0
    %904 = vmatpush1.msra.mxu0 0.0
    %905 = vmatprep.subr.mxu0 0.0
    %906 = vmatpush1.msra.mxu0 0.0
    %907 = vmatprep.subr.mxu0 %v751
    %908 = vmatpush1.msra.mxu0 %v750
    %909 = vmatprep.subr.mxu0 %v747
    %910 = vmatpush1.msra.mxu0 %v746
    %911 = vmatprep.subr.mxu0 %v743
    %912 = vmatpush1.msra.mxu0 %v742
    %913 = vmatprep.subr.mxu0 %v739
    %914 = vmatpush1.msra.mxu0 %v738
    %915 = vmatprep.subr.mxu0 0.0
    %916 = vmatpush2.msra.mxu0 0.0
    %917 = vmatprep.subr.mxu0 0.0
    %918 = vmatpush2.msra.mxu0 0.0
    %919 = vmatprep.subr.mxu0 0.0
    %920 = vmatpush2.msra.mxu0 0.0
    %921 = vmatprep.subr.mxu0 0.0
    %922 = vmatpush2.msra.mxu0 0.0
    %923 = vmatprep.subr.mxu0 0.0
    %924 = vmatpush2.msra.mxu0 0.0
    %925 = vmatprep.subr.mxu0 0.0
    %926 = vmatpush2.msra.mxu0 0.0
    %927 = vmatprep.subr.mxu0 0.0
    %928 = vmatpush2.msra.mxu0 0.0
    %929 = vmatprep.subr.mxu0 0.0
    %930 = vmatpush2.msra.mxu0 0.0
    %931 = vmatprep.subr.mxu0 0.0
    %932 = vmatpush2.msra.mxu0 0.0
    %933 = vmatprep.subr.mxu0 0.0
    %934 = vmatpush2.msra.mxu0 0.0
    %935 = vmatprep.subr.mxu0 0.0
    %936 = vmatpush2.msra.mxu0 0.0
    %937 = vmatprep.subr.mxu0 0.0
    %938 = vmatpush2.msra.mxu0 0.0
    %939 = vmatprep.subr.mxu0 0.0
    %940 = vmatpush2.msra.mxu0 0.0
    %941 = vmatprep.subr.mxu0 0.0
    %942 = vmatpush2.msra.mxu0 0.0
    %943 = vmatprep.subr.mxu0 0.0
    %944 = vmatpush2.msra.mxu0 0.0
    %945 = vmatprep.subr.mxu0 0.0
    %946 = vmatpush2.msra.mxu0 0.0
    %947 = vmatprep.mubr.f32.mxu0 0.0
    %948 = vmatmul.mubr.f32.gmra.mxu0 %v783
    %v949 = vpop.f32.mrf.mxu0
    %v950 = vadd.f32 %v765, %v949
    %v951 = vpop.f32.mrf.mxu0
    %v952 = vadd.f32 %v765, %v951
    %953 = vmatprep.mubr.f32.mxu0 0.0
    %954 = vmatmul.mubr.f32.gmra.mxu0 %v786
    %v955 = vpop.f32.mrf.mxu0
    %v956 = vadd.f32 %v770, %v955
    %v957 = vpop.f32.mrf.mxu0
    %v958 = vadd.f32 %v770, %v957
    %959 = vmatprep.mubr.f32.mxu0 0.0
    %960 = vmatmul.mubr.f32.gmra.mxu0 %v789
    %v961 = vpop.f32.mrf.mxu0
    %v962 = vadd.f32 %v775, %v961
    %v963 = vpop.f32.mrf.mxu0
    %v964 = vadd.f32 %v775, %v963
    %965 = vmatprep.mubr.f32.mxu0 0.0
    %966 = vmatmul.mubr.f32.gmra.mxu0 %v792
    %v967 = vpop.f32.mrf.mxu0
    %v968 = vadd.f32 %v780, %v967
    %v969 = vpop.f32.mrf.mxu0
    %v970 = vadd.f32 %v780, %v969
    %971 = vdwg.mxu0
    %v972 = vmax.f32 %v861, 0.0
    %v973 = vmax.f32 %v863, 0.0
    %v974 = vmax.f32 %v950, 0.0
    %v975 = vmax.f32 %v952, 0.0
    %v976 = vmax.f32 %v867, 0.0
    %v977 = vmax.f32 %v869, 0.0
    %v978 = vmax.f32 %v956, 0.0
    %v979 = vmax.f32 %v958, 0.0
    %v980 = vmax.f32 %v873, 0.0
    %v981 = vmax.f32 %v875, 0.0
    %v982 = vmax.f32 %v962, 0.0
    %v983 = vmax.f32 %v964, 0.0
    %v984 = vmax.f32 %v879, 0.0
    %v985 = vmax.f32 %v881, 0.0
    %v986 = vmax.f32 %v968, 0.0
    %v987 = vmax.f32 %v970, 0.0
    %s988 = scalar_lea.vmem [#allocation2], 128
    %v989 = vld [vmem:[%s988] sm:$0xff]
    %v990 = vld [vmem:[%s988 + $0x8] sm:$0xff]
    %v991 = vld [vmem:[%s988 + $0x10] sm:$0xff]
    %v992 = vld [vmem:[%s988 + $0x18] sm:$0xff]
    %s993 = scalar_lea.vmem [#allocation2], 192
    %v994 = vld [vmem:[%s993] sm:$0xff]
    %v995 = vld [vmem:[%s993 + $0x8] sm:$0xff]
    %v996 = vld [vmem:[%s993 + $0x10] sm:$0xff]
    %v997 = vld [vmem:[%s993 + $0x18] sm:$0xff]
    %v999 = vsel %vm73, %v994, 0
    %v1002 = vsel %vm73, %v995, 0
    %v1005 = vsel %vm73, %v996, 0
    %v1008 = vsel %vm73, %v997, 0
    %1010 = vmatprep.subr.mxu0 0.0
    %1011 = vmatpush1.msra.mxu0 0.0
    %1012 = vmatprep.subr.mxu0 0.0
    %1013 = vmatpush1.msra.mxu0 0.0
    %1014 = vmatprep.subr.mxu0 0.0
    %1015 = vmatpush1.msra.mxu0 0.0
    %1016 = vmatprep.subr.mxu0 0.0
    %1017 = vmatpush1.msra.mxu0 0.0
    %1018 = vmatprep.subr.mxu0 0.0
    %1019 = vmatpush1.msra.mxu0 0.0
    %1020 = vmatprep.subr.mxu0 0.0
    %1021 = vmatpush1.msra.mxu0 0.0
    %1022 = vmatprep.subr.mxu0 0.0
    %1023 = vmatpush1.msra.mxu0 0.0
    %1024 = vmatprep.subr.mxu0 0.0
    %1025 = vmatpush1.msra.mxu0 0.0
    %1026 = vmatprep.subr.mxu0 0.0
    %1027 = vmatpush1.msra.mxu0 0.0
    %1028 = vmatprep.subr.mxu0 0.0
    %1029 = vmatpush1.msra.mxu0 0.0
    %1030 = vmatprep.subr.mxu0 0.0
    %1031 = vmatpush1.msra.mxu0 0.0
    %1032 = vmatprep.subr.mxu0 0.0
    %1033 = vmatpush1.msra.mxu0 0.0
    %1034 = vmatprep.subr.mxu0 %v42
    %1035 = vmatpush1.msra.mxu0 %v41
    %1036 = vmatprep.subr.mxu0 %v38
    %1037 = vmatpush1.msra.mxu0 %v37
    %1038 = vmatprep.subr.mxu0 %v34
    %1039 = vmatpush1.msra.mxu0 %v33
    %1040 = vmatprep.subr.mxu0 %v30
    %1041 = vmatpush1.msra.mxu0 %v29
    %1042 = vmatprep.subr.mxu0 0.0
    %1043 = vmatpush2.msra.mxu0 0.0
    %1044 = vmatprep.subr.mxu0 0.0
    %1045 = vmatpush2.msra.mxu0 0.0
    %1046 = vmatprep.subr.mxu0 0.0
    %1047 = vmatpush2.msra.mxu0 0.0
    %1048 = vmatprep.subr.mxu0 0.0
    %1049 = vmatpush2.msra.mxu0 0.0
    %1050 = vmatprep.subr.mxu0 0.0
    %1051 = vmatpush2.msra.mxu0 0.0
    %1052 = vmatprep.subr.mxu0 0.0
    %1053 = vmatpush2.msra.mxu0 0.0
    %1054 = vmatprep.subr.mxu0 0.0
    %1055 = vmatpush2.msra.mxu0 0.0
    %1056 = vmatprep.subr.mxu0 0.0
    %1057 = vmatpush2.msra.mxu0 0.0
    %1058 = vmatprep.subr.mxu0 0.0
    %1059 = vmatpush2.msra.mxu0 0.0
    %1060 = vmatprep.subr.mxu0 0.0
    %1061 = vmatpush2.msra.mxu0 0.0
    %1062 = vmatprep.subr.mxu0 0.0
    %1063 = vmatpush2.msra.mxu0 0.0
    %1064 = vmatprep.subr.mxu0 0.0
    %1065 = vmatpush2.msra.mxu0 0.0
    %1066 = vmatprep.subr.mxu0 0.0
    %1067 = vmatpush2.msra.mxu0 0.0
    %1068 = vmatprep.subr.mxu0 0.0
    %1069 = vmatpush2.msra.mxu0 0.0
    %1070 = vmatprep.subr.mxu0 0.0
    %1071 = vmatpush2.msra.mxu0 0.0
    %1072 = vmatprep.subr.mxu0 0.0
    %1073 = vmatpush2.msra.mxu0 0.0
    %1074 = vmatprep.mubr.f32.mxu0 0.0
    %1075 = vmatmul.mubr.f32.gmra.mxu0 %v999
    %v1076 = vpop.f32.mrf.mxu0
    %v1077 = vadd.f32 0.0, %v1076
    %v1078 = vpop.f32.mrf.mxu0
    %v1079 = vadd.f32 0.0, %v1078
    %1080 = vmatprep.mubr.f32.mxu0 0.0
    %1081 = vmatmul.mubr.f32.gmra.mxu0 %v1002
    %v1082 = vpop.f32.mrf.mxu0
    %v1083 = vadd.f32 0.0, %v1082
    %v1084 = vpop.f32.mrf.mxu0
    %v1085 = vadd.f32 0.0, %v1084
    %1086 = vmatprep.mubr.f32.mxu0 0.0
    %1087 = vmatmul.mubr.f32.gmra.mxu0 %v1005
    %v1088 = vpop.f32.mrf.mxu0
    %v1089 = vadd.f32 0.0, %v1088
    %v1090 = vpop.f32.mrf.mxu0
    %v1091 = vadd.f32 0.0, %v1090
    %1092 = vmatprep.mubr.f32.mxu0 0.0
    %1093 = vmatmul.mubr.f32.gmra.mxu0 %v1008
    %v1094 = vpop.f32.mrf.mxu0
    %v1095 = vadd.f32 0.0, %v1094
    %v1096 = vpop.f32.mrf.mxu0
    %v1097 = vadd.f32 0.0, %v1096
    %1098 = vdwg.mxu0
    %1099 = vmatprep.subr.mxu0 0.0
    %1100 = vmatpush1.msra.mxu0 0.0
    %1101 = vmatprep.subr.mxu0 0.0
    %1102 = vmatpush1.msra.mxu0 0.0
    %1103 = vmatprep.subr.mxu0 0.0
    %1104 = vmatpush1.msra.mxu0 0.0
    %1105 = vmatprep.subr.mxu0 0.0
    %1106 = vmatpush1.msra.mxu0 0.0
    %1107 = vmatprep.subr.mxu0 0.0
    %1108 = vmatpush1.msra.mxu0 0.0
    %1109 = vmatprep.subr.mxu0 0.0
    %1110 = vmatpush1.msra.mxu0 0.0
    %1111 = vmatprep.subr.mxu0 0.0
    %1112 = vmatpush1.msra.mxu0 0.0
    %1113 = vmatprep.subr.mxu0 0.0
    %1114 = vmatpush1.msra.mxu0 0.0
    %1115 = vmatprep.subr.mxu0 0.0
    %1116 = vmatpush1.msra.mxu0 0.0
    %1117 = vmatprep.subr.mxu0 0.0
    %1118 = vmatpush1.msra.mxu0 0.0
    %1119 = vmatprep.subr.mxu0 0.0
    %1120 = vmatpush1.msra.mxu0 0.0
    %1121 = vmatprep.subr.mxu0 0.0
    %1122 = vmatpush1.msra.mxu0 0.0
    %1123 = vmatprep.subr.mxu0 %v44
    %1124 = vmatpush1.msra.mxu0 %v43
    %1125 = vmatprep.subr.mxu0 %v40
    %1126 = vmatpush1.msra.mxu0 %v39
    %1127 = vmatprep.subr.mxu0 %v36
    %1128 = vmatpush1.msra.mxu0 %v35
    %1129 = vmatprep.subr.mxu0 %v32
    %1130 = vmatpush1.msra.mxu0 %v31
    %1131 = vmatprep.subr.mxu0 0.0
    %1132 = vmatpush2.msra.mxu0 0.0
    %1133 = vmatprep.subr.mxu0 0.0
    %1134 = vmatpush2.msra.mxu0 0.0
    %1135 = vmatprep.subr.mxu0 0.0
    %1136 = vmatpush2.msra.mxu0 0.0
    %1137 = vmatprep.subr.mxu0 0.0
    %1138 = vmatpush2.msra.mxu0 0.0
    %1139 = vmatprep.subr.mxu0 0.0
    %1140 = vmatpush2.msra.mxu0 0.0
    %1141 = vmatprep.subr.mxu0 0.0
    %1142 = vmatpush2.msra.mxu0 0.0
    %1143 = vmatprep.subr.mxu0 0.0
    %1144 = vmatpush2.msra.mxu0 0.0
    %1145 = vmatprep.subr.mxu0 0.0
    %1146 = vmatpush2.msra.mxu0 0.0
    %1147 = vmatprep.subr.mxu0 0.0
    %1148 = vmatpush2.msra.mxu0 0.0
    %1149 = vmatprep.subr.mxu0 0.0
    %1150 = vmatpush2.msra.mxu0 0.0
    %1151 = vmatprep.subr.mxu0 0.0
    %1152 = vmatpush2.msra.mxu0 0.0
    %1153 = vmatprep.subr.mxu0 0.0
    %1154 = vmatpush2.msra.mxu0 0.0
    %1155 = vmatprep.subr.mxu0 0.0
    %1156 = vmatpush2.msra.mxu0 0.0
    %1157 = vmatprep.subr.mxu0 0.0
    %1158 = vmatpush2.msra.mxu0 0.0
    %1159 = vmatprep.subr.mxu0 0.0
    %1160 = vmatpush2.msra.mxu0 0.0
    %1161 = vmatprep.subr.mxu0 0.0
    %1162 = vmatpush2.msra.mxu0 0.0
    %1163 = vmatprep.mubr.f32.mxu0 0.0
    %1164 = vmatmul.mubr.f32.gmra.mxu0 %v999
    %v1165 = vpop.f32.mrf.mxu0
    %v1166 = vadd.f32 0.0, %v1165
    %v1167 = vpop.f32.mrf.mxu0
    %v1168 = vadd.f32 0.0, %v1167
    %1169 = vmatprep.mubr.f32.mxu0 0.0
    %1170 = vmatmul.mubr.f32.gmra.mxu0 %v1002
    %v1171 = vpop.f32.mrf.mxu0
    %v1172 = vadd.f32 0.0, %v1171
    %v1173 = vpop.f32.mrf.mxu0
    %v1174 = vadd.f32 0.0, %v1173
    %1175 = vmatprep.mubr.f32.mxu0 0.0
    %1176 = vmatmul.mubr.f32.gmra.mxu0 %v1005
    %v1177 = vpop.f32.mrf.mxu0
    %v1178 = vadd.f32 0.0, %v1177
    %v1179 = vpop.f32.mrf.mxu0
    %v1180 = vadd.f32 0.0, %v1179
    %1181 = vmatprep.mubr.f32.mxu0 0.0
    %1182 = vmatmul.mubr.f32.gmra.mxu0 %v1008
    %v1183 = vpop.f32.mrf.mxu0
    %v1184 = vadd.f32 0.0, %v1183
    %v1185 = vpop.f32.mrf.mxu0
    %v1186 = vadd.f32 0.0, %v1185
    %1187 = vdwg.mxu0
    %v1189 = vsel %vm73, %v989, 0
    %v1192 = vsel %vm73, %v990, 0
    %v1195 = vsel %vm73, %v991, 0
    %v1198 = vsel %vm73, %v992, 0
    %1200 = vmatprep.subr.mxu0 0.0
    %1201 = vmatpush1.msra.mxu0 0.0
    %1202 = vmatprep.subr.mxu0 0.0
    %1203 = vmatpush1.msra.mxu0 0.0
    %1204 = vmatprep.subr.mxu0 0.0
    %1205 = vmatpush1.msra.mxu0 0.0
    %1206 = vmatprep.subr.mxu0 0.0
    %1207 = vmatpush1.msra.mxu0 0.0
    %1208 = vmatprep.subr.mxu0 0.0
    %1209 = vmatpush1.msra.mxu0 0.0
    %1210 = vmatprep.subr.mxu0 0.0
    %1211 = vmatpush1.msra.mxu0 0.0
    %1212 = vmatprep.subr.mxu0 0.0
    %1213 = vmatpush1.msra.mxu0 0.0
    %1214 = vmatprep.subr.mxu0 0.0
    %1215 = vmatpush1.msra.mxu0 0.0
    %1216 = vmatprep.subr.mxu0 0.0
    %1217 = vmatpush1.msra.mxu0 0.0
    %1218 = vmatprep.subr.mxu0 0.0
    %1219 = vmatpush1.msra.mxu0 0.0
    %1220 = vmatprep.subr.mxu0 0.0
    %1221 = vmatpush1.msra.mxu0 0.0
    %1222 = vmatprep.subr.mxu0 0.0
    %1223 = vmatpush1.msra.mxu0 0.0
    %1224 = vmatprep.subr.mxu0 %v985
    %1225 = vmatpush1.msra.mxu0 %v984
    %1226 = vmatprep.subr.mxu0 %v981
    %1227 = vmatpush1.msra.mxu0 %v980
    %1228 = vmatprep.subr.mxu0 %v977
    %1229 = vmatpush1.msra.mxu0 %v976
    %1230 = vmatprep.subr.mxu0 %v973
    %1231 = vmatpush1.msra.mxu0 %v972
    %1232 = vmatprep.subr.mxu0 0.0
    %1233 = vmatpush2.msra.mxu0 0.0
    %1234 = vmatprep.subr.mxu0 0.0
    %1235 = vmatpush2.msra.mxu0 0.0
    %1236 = vmatprep.subr.mxu0 0.0
    %1237 = vmatpush2.msra.mxu0 0.0
    %1238 = vmatprep.subr.mxu0 0.0
    %1239 = vmatpush2.msra.mxu0 0.0
    %1240 = vmatprep.subr.mxu0 0.0
    %1241 = vmatpush2.msra.mxu0 0.0
    %1242 = vmatprep.subr.mxu0 0.0
    %1243 = vmatpush2.msra.mxu0 0.0
    %1244 = vmatprep.subr.mxu0 0.0
    %1245 = vmatpush2.msra.mxu0 0.0
    %1246 = vmatprep.subr.mxu0 0.0
    %1247 = vmatpush2.msra.mxu0 0.0
    %1248 = vmatprep.subr.mxu0 0.0
    %1249 = vmatpush2.msra.mxu0 0.0
    %1250 = vmatprep.subr.mxu0 0.0
    %1251 = vmatpush2.msra.mxu0 0.0
    %1252 = vmatprep.subr.mxu0 0.0
    %1253 = vmatpush2.msra.mxu0 0.0
    %1254 = vmatprep.subr.mxu0 0.0
    %1255 = vmatpush2.msra.mxu0 0.0
    %1256 = vmatprep.subr.mxu0 0.0
    %1257 = vmatpush2.msra.mxu0 0.0
    %1258 = vmatprep.subr.mxu0 0.0
    %1259 = vmatpush2.msra.mxu0 0.0
    %1260 = vmatprep.subr.mxu0 0.0
    %1261 = vmatpush2.msra.mxu0 0.0
    %1262 = vmatprep.subr.mxu0 0.0
    %1263 = vmatpush2.msra.mxu0 0.0
    %1264 = vmatprep.mubr.f32.mxu0 0.0
    %1265 = vmatmul.mubr.f32.gmra.mxu0 %v1189
    %v1266 = vpop.f32.mrf.mxu0
    %v1267 = vadd.f32 %v1077, %v1266
    %v1268 = vpop.f32.mrf.mxu0
    %v1269 = vadd.f32 %v1079, %v1268
    %1270 = vmatprep.mubr.f32.mxu0 0.0
    %1271 = vmatmul.mubr.f32.gmra.mxu0 %v1192
    %v1272 = vpop.f32.mrf.mxu0
    %v1273 = vadd.f32 %v1083, %v1272
    %v1274 = vpop.f32.mrf.mxu0
    %v1275 = vadd.f32 %v1085, %v1274
    %1276 = vmatprep.mubr.f32.mxu0 0.0
    %1277 = vmatmul.mubr.f32.gmra.mxu0 %v1195
    %v1278 = vpop.f32.mrf.mxu0
    %v1279 = vadd.f32 %v1089, %v1278
    %v1280 = vpop.f32.mrf.mxu0
    %v1281 = vadd.f32 %v1091, %v1280
    %1282 = vmatprep.mubr.f32.mxu0 0.0
    %1283 = vmatmul.mubr.f32.gmra.mxu0 %v1198
    %v1284 = vpop.f32.mrf.mxu0
    %v1285 = vadd.f32 %v1095, %v1284
    %v1286 = vpop.f32.mrf.mxu0
    %v1287 = vadd.f32 %v1097, %v1286
    %1288 = vdwg.mxu0
    %1289 = vmatprep.subr.mxu0 0.0
    %1290 = vmatpush1.msra.mxu0 0.0
    %1291 = vmatprep.subr.mxu0 0.0
    %1292 = vmatpush1.msra.mxu0 0.0
    %1293 = vmatprep.subr.mxu0 0.0
    %1294 = vmatpush1.msra.mxu0 0.0
    %1295 = vmatprep.subr.mxu0 0.0
    %1296 = vmatpush1.msra.mxu0 0.0
    %1297 = vmatprep.subr.mxu0 0.0
    %1298 = vmatpush1.msra.mxu0 0.0
    %1299 = vmatprep.subr.mxu0 0.0
    %1300 = vmatpush1.msra.mxu0 0.0
    %1301 = vmatprep.subr.mxu0 0.0
    %1302 = vmatpush1.msra.mxu0 0.0
    %1303 = vmatprep.subr.mxu0 0.0
    %1304 = vmatpush1.msra.mxu0 0.0
    %1305 = vmatprep.subr.mxu0 0.0
    %1306 = vmatpush1.msra.mxu0 0.0
    %1307 = vmatprep.subr.mxu0 0.0
    %1308 = vmatpush1.msra.mxu0 0.0
    %1309 = vmatprep.subr.mxu0 0.0
    %1310 = vmatpush1.msra.mxu0 0.0
    %1311 = vmatprep.subr.mxu0 0.0
    %1312 = vmatpush1.msra.mxu0 0.0
    %1313 = vmatprep.subr.mxu0 %v987
    %1314 = vmatpush1.msra.mxu0 %v986
    %1315 = vmatprep.subr.mxu0 %v983
    %1316 = vmatpush1.msra.mxu0 %v982
    %1317 = vmatprep.subr.mxu0 %v979
    %1318 = vmatpush1.msra.mxu0 %v978
    %1319 = vmatprep.subr.mxu0 %v975
    %1320 = vmatpush1.msra.mxu0 %v974
    %1321 = vmatprep.subr.mxu0 0.0
    %1322 = vmatpush2.msra.mxu0 0.0
    %1323 = vmatprep.subr.mxu0 0.0
    %1324 = vmatpush2.msra.mxu0 0.0
    %1325 = vmatprep.subr.mxu0 0.0
    %1326 = vmatpush2.msra.mxu0 0.0
    %1327 = vmatprep.subr.mxu0 0.0
    %1328 = vmatpush2.msra.mxu0 0.0
    %1329 = vmatprep.subr.mxu0 0.0
    %1330 = vmatpush2.msra.mxu0 0.0
    %1331 = vmatprep.subr.mxu0 0.0
    %1332 = vmatpush2.msra.mxu0 0.0
    %1333 = vmatprep.subr.mxu0 0.0
    %1334 = vmatpush2.msra.mxu0 0.0
    %1335 = vmatprep.subr.mxu0 0.0
    %1336 = vmatpush2.msra.mxu0 0.0
    %1337 = vmatprep.subr.mxu0 0.0
    %1338 = vmatpush2.msra.mxu0 0.0
    %1339 = vmatprep.subr.mxu0 0.0
    %1340 = vmatpush2.msra.mxu0 0.0
    %1341 = vmatprep.subr.mxu0 0.0
    %1342 = vmatpush2.msra.mxu0 0.0
    %1343 = vmatprep.subr.mxu0 0.0
    %1344 = vmatpush2.msra.mxu0 0.0
    %1345 = vmatprep.subr.mxu0 0.0
    %1346 = vmatpush2.msra.mxu0 0.0
    %1347 = vmatprep.subr.mxu0 0.0
    %1348 = vmatpush2.msra.mxu0 0.0
    %1349 = vmatprep.subr.mxu0 0.0
    %1350 = vmatpush2.msra.mxu0 0.0
    %1351 = vmatprep.subr.mxu0 0.0
    %1352 = vmatpush2.msra.mxu0 0.0
    %1353 = vmatprep.mubr.f32.mxu0 0.0
    %1354 = vmatmul.mubr.f32.gmra.mxu0 %v1189
    %v1355 = vpop.f32.mrf.mxu0
    %v1356 = vadd.f32 %v1166, %v1355
    %v1357 = vpop.f32.mrf.mxu0
    %v1358 = vadd.f32 %v1168, %v1357
    %1359 = vmatprep.mubr.f32.mxu0 0.0
    %1360 = vmatmul.mubr.f32.gmra.mxu0 %v1192
    %v1361 = vpop.f32.mrf.mxu0
    %v1362 = vadd.f32 %v1172, %v1361
    %v1363 = vpop.f32.mrf.mxu0
    %v1364 = vadd.f32 %v1174, %v1363
    %1365 = vmatprep.mubr.f32.mxu0 0.0
    %1366 = vmatmul.mubr.f32.gmra.mxu0 %v1195
    %v1367 = vpop.f32.mrf.mxu0
    %v1368 = vadd.f32 %v1178, %v1367
    %v1369 = vpop.f32.mrf.mxu0
    %v1370 = vadd.f32 %v1180, %v1369
    %1371 = vmatprep.mubr.f32.mxu0 0.0
    %1372 = vmatmul.mubr.f32.gmra.mxu0 %v1198
    %v1373 = vpop.f32.mrf.mxu0
    %v1374 = vadd.f32 %v1184, %v1373
    %v1375 = vpop.f32.mrf.mxu0
    %v1376 = vadd.f32 %v1186, %v1375
    %1377 = vdwg.mxu0
    %s1378 = scalar_lea.vmem %s2, 128
    %v1379 = vld [vmem:[%s1378] sm:$0xff]
    %v1380 = vld [vmem:[%s1378 + $0x8] sm:$0xff]
    %v1381 = vld [vmem:[%s1378 + $0x10] sm:$0xff]
    %v1382 = vld [vmem:[%s1378 + $0x18] sm:$0xff]
    %1384 = vset.pattern.permute.xlu0 0
    %1385 = vperm.xlu0 %1384, %v1379
    %v1386 = vpop.permute.xlu0 %1385
    %1389 = vset.pattern.permute.xlu0 0
    %1390 = vperm.xlu0 %1389, %v1380
    %v1391 = vpop.permute.xlu0 %1390
    %1394 = vset.pattern.permute.xlu0 0
    %1395 = vperm.xlu0 %1394, %v1381
    %v1396 = vpop.permute.xlu0 %1395
    %1399 = vset.pattern.permute.xlu0 0
    %1400 = vperm.xlu0 %1399, %v1382
    %v1401 = vpop.permute.xlu0 %1400
    %v1403 = vadd.f32 %v1267, %v1386
    %v1404 = vadd.f32 %v1269, %v1386
    %v1405 = vadd.f32 %v1356, %v1386
    %v1406 = vadd.f32 %v1358, %v1386
    %v1407 = vadd.f32 %v1273, %v1391
    %v1408 = vadd.f32 %v1275, %v1391
    %v1409 = vadd.f32 %v1362, %v1391
    %v1410 = vadd.f32 %v1364, %v1391
    %v1411 = vadd.f32 %v1279, %v1396
    %v1412 = vadd.f32 %v1281, %v1396
    %v1413 = vadd.f32 %v1368, %v1396
    %v1414 = vadd.f32 %v1370, %v1396
    %v1415 = vadd.f32 %v1285, %v1401
    %v1416 = vadd.f32 %v1287, %v1401
    %v1417 = vadd.f32 %v1374, %v1401
    %v1418 = vadd.f32 %v1376, %v1401
    %v1419 = vmax.f32 %v1403, 0.0
    %v1420 = vmax.f32 %v1404, 0.0
    %v1421 = vmax.f32 %v1405, 0.0
    %v1422 = vmax.f32 %v1406, 0.0
    %v1423 = vmax.f32 %v1407, 0.0
    %v1424 = vmax.f32 %v1408, 0.0
    %v1425 = vmax.f32 %v1409, 0.0
    %v1426 = vmax.f32 %v1410, 0.0
    %v1427 = vmax.f32 %v1411, 0.0
    %v1428 = vmax.f32 %v1412, 0.0
    %v1429 = vmax.f32 %v1413, 0.0
    %v1430 = vmax.f32 %v1414, 0.0
    %v1431 = vmax.f32 %v1415, 0.0
    %v1432 = vmax.f32 %v1416, 0.0
    %v1433 = vmax.f32 %v1417, 0.0
    %v1434 = vmax.f32 %v1418, 0.0
    %s1435 = scalar_lea.vmem [#allocation2], 160
    %v1436 = vld [vmem:[%s1435] sm:$0xff]
    %v1437 = vld [vmem:[%s1435 + $0x8] sm:$0xff]
    %v1438 = vld [vmem:[%s1435 + $0x10] sm:$0xff]
    %v1439 = vld [vmem:[%s1435 + $0x18] sm:$0xff]
    %s1440 = scalar_lea.vmem %s2, 160
    %v1441 = vld [vmem:[%s1440] sm:$0xff]
    %v1442 = vld [vmem:[%s1440 + $0x8] sm:$0xff]
    %v1443 = vld [vmem:[%s1440 + $0x10] sm:$0xff]
    %v1444 = vld [vmem:[%s1440 + $0x18] sm:$0xff]
    %1446 = vset.pattern.permute.xlu0 0
    %1447 = vperm.xlu0 %1446, %v1441
    %v1448 = vpop.permute.xlu0 %1447
    %1451 = vset.pattern.permute.xlu0 0
    %1452 = vperm.xlu0 %1451, %v1442
    %v1453 = vpop.permute.xlu0 %1452
    %1455 = vset.pattern.permute.xlu0 0
    %1456 = vperm.xlu0 %1455, %v1443
    %v1457 = vpop.permute.xlu0 %1456
    %1459 = vset.pattern.permute.xlu0 0
    %1460 = vperm.xlu0 %1459, %v1444
    %v1461 = vpop.permute.xlu0 %1460
    %v1463 = vsel %vm73, %v1436, 0
    %v1466 = vsel %vm73, %v1437, 0
    %v1469 = vsel %vm73, %v1438, 0
    %v1472 = vsel %vm73, %v1439, 0
    %1474 = vmatprep.subr.mxu0 0.0
    %1475 = vmatpush1.msra.mxu0 0.0
    %1476 = vmatprep.subr.mxu0 0.0
    %1477 = vmatpush1.msra.mxu0 0.0
    %1478 = vmatprep.subr.mxu0 0.0
    %1479 = vmatpush1.msra.mxu0 0.0
    %1480 = vmatprep.subr.mxu0 0.0
    %1481 = vmatpush1.msra.mxu0 0.0
    %1482 = vmatprep.subr.mxu0 0.0
    %1483 = vmatpush1.msra.mxu0 0.0
    %1484 = vmatprep.subr.mxu0 0.0
    %1485 = vmatpush1.msra.mxu0 0.0
    %1486 = vmatprep.subr.mxu0 0.0
    %1487 = vmatpush1.msra.mxu0 0.0
    %1488 = vmatprep.subr.mxu0 0.0
    %1489 = vmatpush1.msra.mxu0 0.0
    %1490 = vmatprep.subr.mxu0 0.0
    %1491 = vmatpush1.msra.mxu0 0.0
    %1492 = vmatprep.subr.mxu0 0.0
    %1493 = vmatpush1.msra.mxu0 0.0
    %1494 = vmatprep.subr.mxu0 0.0
    %1495 = vmatpush1.msra.mxu0 0.0
    %1496 = vmatprep.subr.mxu0 0.0
    %1497 = vmatpush1.msra.mxu0 0.0
    %1498 = vmatprep.subr.mxu0 %v1432
    %1499 = vmatpush1.msra.mxu0 %v1431
    %1500 = vmatprep.subr.mxu0 %v1428
    %1501 = vmatpush1.msra.mxu0 %v1427
    %1502 = vmatprep.subr.mxu0 %v1424
    %1503 = vmatpush1.msra.mxu0 %v1423
    %1504 = vmatprep.subr.mxu0 %v1420
    %1505 = vmatpush1.msra.mxu0 %v1419
    %1506 = vmatprep.subr.mxu0 0.0
    %1507 = vmatpush2.msra.mxu0 0.0
    %1508 = vmatprep.subr.mxu0 0.0
    %1509 = vmatpush2.msra.mxu0 0.0
    %1510 = vmatprep.subr.mxu0 0.0
    %1511 = vmatpush2.msra.mxu0 0.0
    %1512 = vmatprep.subr.mxu0 0.0
    %1513 = vmatpush2.msra.mxu0 0.0
    %1514 = vmatprep.subr.mxu0 0.0
    %1515 = vmatpush2.msra.mxu0 0.0
    %1516 = vmatprep.subr.mxu0 0.0
    %1517 = vmatpush2.msra.mxu0 0.0
    %1518 = vmatprep.subr.mxu0 0.0
    %1519 = vmatpush2.msra.mxu0 0.0
    %1520 = vmatprep.subr.mxu0 0.0
    %1521 = vmatpush2.msra.mxu0 0.0
    %1522 = vmatprep.subr.mxu0 0.0
    %1523 = vmatpush2.msra.mxu0 0.0
    %1524 = vmatprep.subr.mxu0 0.0
    %1525 = vmatpush2.msra.mxu0 0.0
    %1526 = vmatprep.subr.mxu0 0.0
    %1527 = vmatpush2.msra.mxu0 0.0
    %1528 = vmatprep.subr.mxu0 0.0
    %1529 = vmatpush2.msra.mxu0 0.0
    %1530 = vmatprep.subr.mxu0 0.0
    %1531 = vmatpush2.msra.mxu0 0.0
    %1532 = vmatprep.subr.mxu0 0.0
    %1533 = vmatpush2.msra.mxu0 0.0
    %1534 = vmatprep.subr.mxu0 0.0
    %1535 = vmatpush2.msra.mxu0 0.0
    %1536 = vmatprep.subr.mxu0 0.0
    %1537 = vmatpush2.msra.mxu0 0.0
    %1538 = vmatprep.mubr.f32.mxu0 0.0
    %1539 = vmatmul.mubr.f32.gmra.mxu0 %v1463
    %v1540 = vpop.f32.mrf.mxu0
    %v1541 = vadd.f32 %v1448, %v1540
    %v1542 = vpop.f32.mrf.mxu0
    %v1543 = vadd.f32 %v1448, %v1542
    %1544 = vmatprep.mubr.f32.mxu0 0.0
    %1545 = vmatmul.mubr.f32.gmra.mxu0 %v1466
    %v1546 = vpop.f32.mrf.mxu0
    %v1547 = vpop.f32.mrf.mxu0
    %1548 = vmatprep.mubr.f32.mxu0 0.0
    %1549 = vmatmul.mubr.f32.gmra.mxu0 %v1469
    %v1550 = vpop.f32.mrf.mxu0
    %v1551 = vpop.f32.mrf.mxu0
    %1552 = vmatprep.mubr.f32.mxu0 0.0
    %1553 = vmatmul.mubr.f32.gmra.mxu0 %v1472
    %v1554 = vpop.f32.mrf.mxu0
    %v1555 = vpop.f32.mrf.mxu0
    %1556 = vdwg.mxu0
    %1557 = vmatprep.subr.mxu0 0.0
    %1558 = vmatpush1.msra.mxu0 0.0
    %1559 = vmatprep.subr.mxu0 0.0
    %1560 = vmatpush1.msra.mxu0 0.0
    %1561 = vmatprep.subr.mxu0 0.0
    %1562 = vmatpush1.msra.mxu0 0.0
    %1563 = vmatprep.subr.mxu0 0.0
    %1564 = vmatpush1.msra.mxu0 0.0
    %1565 = vmatprep.subr.mxu0 0.0
    %1566 = vmatpush1.msra.mxu0 0.0
    %1567 = vmatprep.subr.mxu0 0.0
    %1568 = vmatpush1.msra.mxu0 0.0
    %1569 = vmatprep.subr.mxu0 0.0
    %1570 = vmatpush1.msra.mxu0 0.0
    %1571 = vmatprep.subr.mxu0 0.0
    %1572 = vmatpush1.msra.mxu0 0.0
    %1573 = vmatprep.subr.mxu0 0.0
    %1574 = vmatpush1.msra.mxu0 0.0
    %1575 = vmatprep.subr.mxu0 0.0
    %1576 = vmatpush1.msra.mxu0 0.0
    %1577 = vmatprep.subr.mxu0 0.0
    %1578 = vmatpush1.msra.mxu0 0.0
    %1579 = vmatprep.subr.mxu0 0.0
    %1580 = vmatpush1.msra.mxu0 0.0
    %1581 = vmatprep.subr.mxu0 %v1434
    %1582 = vmatpush1.msra.mxu0 %v1433
    %1583 = vmatprep.subr.mxu0 %v1430
    %1584 = vmatpush1.msra.mxu0 %v1429
    %1585 = vmatprep.subr.mxu0 %v1426
    %1586 = vmatpush1.msra.mxu0 %v1425
    %1587 = vmatprep.subr.mxu0 %v1422
    %1588 = vmatpush1.msra.mxu0 %v1421
    %1589 = vmatprep.subr.mxu0 0.0
    %1590 = vmatpush2.msra.mxu0 0.0
    %1591 = vmatprep.subr.mxu0 0.0
    %1592 = vmatpush2.msra.mxu0 0.0
    %1593 = vmatprep.subr.mxu0 0.0
    %1594 = vmatpush2.msra.mxu0 0.0
    %1595 = vmatprep.subr.mxu0 0.0
    %1596 = vmatpush2.msra.mxu0 0.0
    %1597 = vmatprep.subr.mxu0 0.0
    %1598 = vmatpush2.msra.mxu0 0.0
    %1599 = vmatprep.subr.mxu0 0.0
    %1600 = vmatpush2.msra.mxu0 0.0
    %1601 = vmatprep.subr.mxu0 0.0
    %1602 = vmatpush2.msra.mxu0 0.0
    %1603 = vmatprep.subr.mxu0 0.0
    %1604 = vmatpush2.msra.mxu0 0.0
    %1605 = vmatprep.subr.mxu0 0.0
    %1606 = vmatpush2.msra.mxu0 0.0
    %1607 = vmatprep.subr.mxu0 0.0
    %1608 = vmatpush2.msra.mxu0 0.0
    %1609 = vmatprep.subr.mxu0 0.0
    %1610 = vmatpush2.msra.mxu0 0.0
    %1611 = vmatprep.subr.mxu0 0.0
    %1612 = vmatpush2.msra.mxu0 0.0
    %1613 = vmatprep.subr.mxu0 0.0
    %1614 = vmatpush2.msra.mxu0 0.0
    %1615 = vmatprep.subr.mxu0 0.0
    %1616 = vmatpush2.msra.mxu0 0.0
    %1617 = vmatprep.subr.mxu0 0.0
    %1618 = vmatpush2.msra.mxu0 0.0
    %1619 = vmatprep.subr.mxu0 0.0
    %1620 = vmatpush2.msra.mxu0 0.0
    %1621 = vmatprep.mubr.f32.mxu0 0.0
    %1622 = vmatmul.mubr.f32.gmra.mxu0 %v1463
    %v1623 = vpop.f32.mrf.mxu0
    %v1624 = vadd.f32 %v1448, %v1623
    %v1625 = vpop.f32.mrf.mxu0
    %v1626 = vadd.f32 %v1448, %v1625
    %1627 = vmatprep.mubr.f32.mxu0 0.0
    %1628 = vmatmul.mubr.f32.gmra.mxu0 %v1466
    %v1629 = vpop.f32.mrf.mxu0
    %v1630 = vpop.f32.mrf.mxu0
    %1631 = vmatprep.mubr.f32.mxu0 0.0
    %1632 = vmatmul.mubr.f32.gmra.mxu0 %v1469
    %v1633 = vpop.f32.mrf.mxu0
    %v1634 = vpop.f32.mrf.mxu0
    %1635 = vmatprep.mubr.f32.mxu0 0.0
    %1636 = vmatmul.mubr.f32.gmra.mxu0 %v1472
    %v1637 = vpop.f32.mrf.mxu0
    %v1638 = vpop.f32.mrf.mxu0
    %1639 = vdwg.mxu0
    %v1640 = vtanh.pop %v1541
    %v1641 = vtanh.pop %v1543
    %v1642 = vtanh.pop %v1624
    %v1643 = vtanh.pop %v1626
    %v1648 = vcombine.low %v1640, %v1641
    %v1649 = vcombine.low %v1642, %v1643
    %1652 = vst [vmem:[#allocation5] sm:$0x77] %v1648
    %1653 = vst [vmem:[#allocation5 + $0x8] sm:$0x77] %v1649
    // Predicated region
    $region18: #{tpu_custom_call.1} parent=1 // pred_check
      _
    $region19: #{tpu_custom_call.1} parent=1 // pred_check_branch
      %1655 = sbr.rel (0) target = $region21
    $region20: #{tpu_custom_call.1} parent=1 // pred_region
      %s1657 = ssub.s32 256, 256
      %1658 = vsyncadd [#allocation4], %s1657
      %s1660 = sshll.u32 [#allocation5], 4
      %s1661 = int_to_ptr.vmem [resolvable:$true] %s1660
      %1663 = dma.vmem_to_hbm [thread:$0]  %s1661, 256, %s3, [#allocation4]
    $region21: #{tpu_custom_call.1} parent=1 // pred_fallthru
      _
    // Predicated region
    $region22: #{tpu_custom_call.1} parent=1 // pred_check
      _
    $region23: #{tpu_custom_call.1} parent=1 // pred_check_branch
      %1665 = sbr.rel (0) target = $region25
    $region24: #{tpu_custom_call.1} parent=1 // pred_region
      %1666 = dma.done [#allocation4], 256
    $region25: #{tpu_custom_call.1} parent=1 // pred_fallthru
      _
    %1667 = vsyncpa [#allocation3], 1
    %1668 = vsyncpa [#allocation4], 1

</llo_original>
